<compile_context>
chip_gen: v7x
topology: tpu7x:2x2x1
jax: 0.10.0
libtpu: 0.0.40
codegen_flags: <defaults>
</compile_context>

<pallas_src>
import functools

import jax
import jax.numpy as jnp
from jax import lax
from jax.experimental import pallas as pl
from jax.experimental.pallas import tpu as pltpu

LANE = 128


def _round_up(n, m):
    return ((n + m - 1) // m) * m


def _net6_kernel(x_ref, w_ref, b_ref, b7_ref, o_ref, *, in_dim, n_hidden):
    """One batch tile: fc1..fc6 (Linear+ReLU), then fc7 in transposed form."""
    h = x_ref[...]                                   # (bm, in_dim), compute dtype
    in_w = in_dim
    for k in range(n_hidden):
        w = w_ref[k]                                 # (128, 128), VMEM resident
        if in_w != LANE:
            w = w[:in_w, :]                          # static slice: free
        z = jnp.dot(h, w, preferred_element_type=jnp.float32)   # MXU, f32 acc
        z = z + b_ref[k:k + 1, :]                    # f32 bias add (VPU)
        h = jnp.maximum(z, 0.0).astype(h.dtype)      # ReLU, back to compute dtype
        in_w = LANE
    # fc7 (out_dim == 1), stored transposed as row 0 of w_ref[n_hidden]:
    #   s[o, j] = sum_d w7t[o, d] * h[j, d]   (A @ B^T, native MXU form).
    # Only row 0 of the (8, bm) result is real -> lane-dense output store.
    w7t = w_ref[n_hidden][:8, :]                     # (8, 128)
    s = lax.dot_general(w7t, h, (((1,), (1,)), ((), ())),
                        preferred_element_type=jnp.float32)      # (8, bm) f32
    o_ref[...] = (s + b7_ref[0, 0]).astype(o_ref.dtype)
    # TODO(synk): nn.Dropout training-mode masking (+1/(1-p) scaling) is not
    # reproduced; this matches eval()/inference semantics.


def _pack_params(params, compute_dtype):
    """Pack weights into (L,128,128), hidden biases into (8,128); fc7 bias scalar."""
    n_layers = len(params)
    w_all = jnp.zeros((n_layers, LANE, LANE), compute_dtype)
    b_all = jnp.zeros((8, LANE), jnp.float32)
    for k, (w, b) in enumerate(params[:-1]):
        fi, fo = w.shape
        w_all = w_all.at[k, :fi, :fo].set(w.astype(compute_dtype))
        b_all = b_all.at[k, :fo].set(b.reshape(-1).astype(jnp.float32))
    w7, b7 = params[-1]
    fi, fo = w7.shape                                # (neurons6, 1)
    w_all = w_all.at[n_layers - 1, :fo, :fi].set(w7.T.astype(compute_dtype))
    b7_s = jnp.asarray(b7, jnp.float32).reshape(1, 1)
    return w_all, b_all, b7_s


def net6_forward(x, params, *, block_m=1024, compute_dtype=jnp.bfloat16,
                 force_pallas=False):
    """Fused Net6 forward.

    x:      (batch, input_dim) float32
    params: list of (W, b) with W shaped (in, out), b shaped (out,)
    compute_dtype: bf16 (default, fastest; f32 accumulation kept) or f32 (exact).
    """
    batch, in_dim = x.shape
    n_layers = len(params)
    n_hidden = n_layers - 1
    out_dim = params[-1][0].shape[1]
    assert in_dim <= LANE and out_dim <= 8 and n_hidden <= 8
    for w, _ in params:
        assert w.shape[0] <= LANE and w.shape[1] <= LANE

    batch_r = _round_up(batch, LANE)

    # Small-batch fast path: a one-tile problem is pure launch/DMA overhead.
    if not force_pallas and batch_r <= LANE:
        h = x
        for w, b in params[:-1]:
            h = jnp.maximum(h @ w + b.reshape(1, -1), 0.0)
        return h @ params[-1][0] + params[-1][1].reshape(1, -1)

    # Batch tile: multiple of 128 so both the x block sublane dim and the
    # lane-dense (8, bm) output block are tile-aligned for any compute dtype.
    bm = min(_round_up(block_m, LANE), batch_r)
    if batch_r // bm < 2 and batch_r >= 2 * LANE:
        bm = max(LANE, (batch_r // 2) // LANE * LANE)   # >=2 steps (v7x megacore)
    batch_p = _round_up(batch, bm)
    grid = (batch_p // bm,)

    x_p = jnp.zeros((batch_p, in_dim), compute_dtype).at[:batch].set(
        x.astype(compute_dtype))
    w_all, b_all, b7 = _pack_params(params, compute_dtype)

    in_specs = [
        pl.BlockSpec((bm, in_dim), lambda i: (i, 0)),               # x, batch-tiled
        pl.BlockSpec((n_layers, LANE, LANE), lambda i: (0, 0, 0)),  # packed weights
        pl.BlockSpec((8, LANE), lambda i: (0, 0)),                  # packed biases
        pl.BlockSpec(memory_space=pltpu.MemorySpace.SMEM),          # fc7 bias scalar
    ]
    out_specs = pl.BlockSpec((8, bm), lambda i: (0, i))
    out_shape = jax.ShapeDtypeStruct((8, batch_p), jnp.float32)

    # Cost estimate reflecting what the kernel actually does / moves.
    flops = 2 * batch_p * (in_dim * LANE + (n_hidden - 1) * LANE * LANE + LANE * 8)
    bytes_accessed = (x_p.size * x_p.dtype.itemsize
                      + w_all.size * w_all.dtype.itemsize
                      + b_all.size * 4 + 4
                      + 8 * batch_p * 4)

    kernel = functools.partial(_net6_kernel, in_dim=in_dim, n_hidden=n_hidden)

    out = pl.pallas_call(
        kernel,
        out_shape=out_shape,
        grid=grid,
        in_specs=in_specs,
        out_specs=out_specs,
        compiler_params=pltpu.CompilerParams(
            dimension_semantics=("parallel",)),
        cost_estimate=pl.CostEstimate(
            flops=flops, transcendentals=0, bytes_accessed=bytes_accessed),
    )(x_p, w_all, b_all, b7)

    # Row 0 of the lane-dense slab holds the real output; slice padding off.
    return out[0, :batch].reshape(batch, 1).astype(jnp.float32)


def init_params(key, dims):
    """Deterministic init mimicking nn.Linear's U(-1/sqrt(fan_in), 1/sqrt(fan_in))."""
    params = []
    for i in range(len(dims) - 1):
        fan_in, fan_out = dims[i], dims[i + 1]
        key, kw, kb = jax.random.split(key, 3)
        bound = 1.0 / jnp.sqrt(jnp.float32(fan_in))
        w = jax.random.uniform(kw, (fan_in, fan_out), jnp.float32, -bound, bound)
        b = jax.random.uniform(kb, (fan_out,), jnp.float32, -bound, bound)
        params.append((w, b))
    return params


if __name__ == "__main__":
    # Shapes consistent with the module's forward:
    # input_dim=32, neurons1..6 = 64, 64, 32, 32, 16, 16, output dim = 1
    input_dim = 32
    dims = [input_dim, 64, 64, 32, 32, 16, 16, 1]
    batch = 256

    key = jax.random.PRNGKey(0)
    key, kx = jax.random.split(key)
    x = jax.random.normal(kx, (batch, input_dim), jnp.float32)
    params = init_params(key, dims)

    # Pure-JAX reference (dropout = identity at inference)
    h = x
    for (w, b) in params[:-1]:
        h = jnp.maximum(h @ w + b.reshape(1, -1), 0.0)
    ref = h @ params[-1][0] + params[-1][1].reshape(1, -1)

    # Exact f32 path through the Pallas kernel with a 2-step batch grid.
    out_f32 = net6_forward(x, params, block_m=128, compute_dtype=jnp.float32,
                           force_pallas=True)
    out_f32 = jax.block_until_ready(out_f32)
    assert out_f32.shape == (batch, 1), out_f32.shape
    assert out_f32.dtype == jnp.float32, out_f32.dtype
    assert jnp.allclose(out_f32, ref, atol=1e-4, rtol=1e-4)

    # Default path: bf16 streaming of x/weights, f32 accumulation.
    out_bf16 = jax.block_until_ready(net6_forward(x, params))
    assert out_bf16.shape == (batch, 1), out_bf16.shape
    assert jnp.allclose(out_bf16, ref, atol=1e-1, rtol=1e-1)

    print("KERNEL_OK")
</pallas_src>

<mosaic_0001>
module attributes {stable_mosaic.version = 11 : i64} {
  func.func @_net6_kernel(%arg0: i32, %arg1: memref<128x32xf32, #tpu.memory_space<vmem>>, %arg2: memref<7x128x128xf32, #tpu.memory_space<vmem>>, %arg3: memref<8x128xf32, #tpu.memory_space<vmem>>, %arg4: memref<1x1xf32, #tpu.memory_space<smem>>, %arg5: memref<8x128xf32, #tpu.memory_space<vmem>>) attributes {dimension_semantics = [#tpu.dimension_semantics<parallel>], iteration_bounds = array<i64: 2>, scalar_prefetch = 0 : i64, scratch_operands = 0 : i64, tpu.core_type = #tpu.core_type<tc>, window_params = [{transform_indices = @transform_0, window_bounds = array<i64: 128, 32>}, {pipeline_mode = #tpu.pipeline_mode<synchronous>, transform_indices = @transform_1, window_bounds = array<i64: 7, 128, 128>}, {pipeline_mode = #tpu.pipeline_mode<synchronous>, transform_indices = @transform_2, window_bounds = array<i64: 8, 128>}, {transform_indices = @transform_3, window_bounds = array<i64: 1, 1>}, {transform_indices = @transform_4, window_bounds = array<i64: 8, 128>}]} {
    %c0 = arith.constant 0 : index
    %c0_0 = arith.constant 0 : index
    %0 = vector.load %arg1[%c0, %c0_0] : memref<128x32xf32, #tpu.memory_space<vmem>>, vector<128x32xf32>
    %c0_1 = arith.constant 0 : index
    %c0_2 = arith.constant 0 : index
    %c0_3 = arith.constant 0 : index
    %1 = vector.load %arg2[%c0_1, %c0_2, %c0_3] : memref<7x128x128xf32, #tpu.memory_space<vmem>>, vector<1x128x128xf32>
    %2 = vector.shape_cast %1 : vector<1x128x128xf32> to vector<128x128xf32>
    %3 = vector.extract_strided_slice %2 {offsets = [0, 0], sizes = [32, 128], strides = [1, 1]} : vector<128x128xf32> to vector<32x128xf32>
    %cst = arith.constant dense<0.000000e+00> : vector<128x128xf32>
    %4 = tpu.matmul %0, %3, %cst {dimension_numbers = #tpu.dot_dimension_numbers<[1], [0], [0], [1], [0, 0, 1, 1], [], []>} : vector<128x32xf32>, vector<32x128xf32>, vector<128x128xf32> -> vector<128x128xf32>
    %c0_4 = arith.constant 0 : index
    %c0_5 = arith.constant 0 : index
    %5 = vector.load %arg3[%c0_4, %c0_5] : memref<8x128xf32, #tpu.memory_space<vmem>>, vector<1x128xf32>
    %6 = vector.broadcast %5 : vector<1x128xf32> to vector<128x128xf32>
    %7 = arith.addf %4, %6 : vector<128x128xf32>
    %cst_6 = arith.constant 0.000000e+00 : f32
    %8 = vector.broadcast %cst_6 : f32 to vector<128x128xf32>
    %9 = arith.maximumf %7, %8 : vector<128x128xf32>
    %c1 = arith.constant 1 : index
    %c0_7 = arith.constant 0 : index
    %c0_8 = arith.constant 0 : index
    %10 = vector.load %arg2[%c1, %c0_7, %c0_8] : memref<7x128x128xf32, #tpu.memory_space<vmem>>, vector<1x128x128xf32>
    %11 = vector.shape_cast %10 : vector<1x128x128xf32> to vector<128x128xf32>
    %cst_9 = arith.constant dense<0.000000e+00> : vector<128x128xf32>
    %12 = tpu.matmul %9, %11, %cst_9 {dimension_numbers = #tpu.dot_dimension_numbers<[1], [0], [0], [1], [0, 0, 1, 1], [], []>} : vector<128x128xf32>, vector<128x128xf32>, vector<128x128xf32> -> vector<128x128xf32>
    %c1_10 = arith.constant 1 : index
    %c0_11 = arith.constant 0 : index
    %13 = vector.load %arg3[%c1_10, %c0_11] : memref<8x128xf32, #tpu.memory_space<vmem>>, vector<1x128xf32>
    %14 = vector.broadcast %13 : vector<1x128xf32> to vector<128x128xf32>
    %15 = arith.addf %12, %14 : vector<128x128xf32>
    %cst_12 = arith.constant 0.000000e+00 : f32
    %16 = vector.broadcast %cst_12 : f32 to vector<128x128xf32>
    %17 = arith.maximumf %15, %16 : vector<128x128xf32>
    %c2 = arith.constant 2 : index
    %c0_13 = arith.constant 0 : index
    %c0_14 = arith.constant 0 : index
    %18 = vector.load %arg2[%c2, %c0_13, %c0_14] : memref<7x128x128xf32, #tpu.memory_space<vmem>>, vector<1x128x128xf32>
    %19 = vector.shape_cast %18 : vector<1x128x128xf32> to vector<128x128xf32>
    %cst_15 = arith.constant dense<0.000000e+00> : vector<128x128xf32>
    %20 = tpu.matmul %17, %19, %cst_15 {dimension_numbers = #tpu.dot_dimension_numbers<[1], [0], [0], [1], [0, 0, 1, 1], [], []>} : vector<128x128xf32>, vector<128x128xf32>, vector<128x128xf32> -> vector<128x128xf32>
    %c2_16 = arith.constant 2 : index
    %c0_17 = arith.constant 0 : index
    %21 = vector.load %arg3[%c2_16, %c0_17] : memref<8x128xf32, #tpu.memory_space<vmem>>, vector<1x128xf32>
    %22 = vector.broadcast %21 : vector<1x128xf32> to vector<128x128xf32>
    %23 = arith.addf %20, %22 : vector<128x128xf32>
    %cst_18 = arith.constant 0.000000e+00 : f32
    %24 = vector.broadcast %cst_18 : f32 to vector<128x128xf32>
    %25 = arith.maximumf %23, %24 : vector<128x128xf32>
    %c3 = arith.constant 3 : index
    %c0_19 = arith.constant 0 : index
    %c0_20 = arith.constant 0 : index
    %26 = vector.load %arg2[%c3, %c0_19, %c0_20] : memref<7x128x128xf32, #tpu.memory_space<vmem>>, vector<1x128x128xf32>
    %27 = vector.shape_cast %26 : vector<1x128x128xf32> to vector<128x128xf32>
    %cst_21 = arith.constant dense<0.000000e+00> : vector<128x128xf32>
    %28 = tpu.matmul %25, %27, %cst_21 {dimension_numbers = #tpu.dot_dimension_numbers<[1], [0], [0], [1], [0, 0, 1, 1], [], []>} : vector<128x128xf32>, vector<128x128xf32>, vector<128x128xf32> -> vector<128x128xf32>
    %c3_22 = arith.constant 3 : index
    %c0_23 = arith.constant 0 : index
    %29 = vector.load %arg3[%c3_22, %c0_23] : memref<8x128xf32, #tpu.memory_space<vmem>>, vector<1x128xf32>
    %30 = vector.broadcast %29 : vector<1x128xf32> to vector<128x128xf32>
    %31 = arith.addf %28, %30 : vector<128x128xf32>
    %cst_24 = arith.constant 0.000000e+00 : f32
    %32 = vector.broadcast %cst_24 : f32 to vector<128x128xf32>
    %33 = arith.maximumf %31, %32 : vector<128x128xf32>
    %c4 = arith.constant 4 : index
    %c0_25 = arith.constant 0 : index
    %c0_26 = arith.constant 0 : index
    %34 = vector.load %arg2[%c4, %c0_25, %c0_26] : memref<7x128x128xf32, #tpu.memory_space<vmem>>, vector<1x128x128xf32>
    %35 = vector.shape_cast %34 : vector<1x128x128xf32> to vector<128x128xf32>
    %cst_27 = arith.constant dense<0.000000e+00> : vector<128x128xf32>
    %36 = tpu.matmul %33, %35, %cst_27 {dimension_numbers = #tpu.dot_dimension_numbers<[1], [0], [0], [1], [0, 0, 1, 1], [], []>} : vector<128x128xf32>, vector<128x128xf32>, vector<128x128xf32> -> vector<128x128xf32>
    %c4_28 = arith.constant 4 : index
    %c0_29 = arith.constant 0 : index
    %37 = vector.load %arg3[%c4_28, %c0_29] : memref<8x128xf32, #tpu.memory_space<vmem>>, vector<1x128xf32>
    %38 = vector.broadcast %37 : vector<1x128xf32> to vector<128x128xf32>
    %39 = arith.addf %36, %38 : vector<128x128xf32>
    %cst_30 = arith.constant 0.000000e+00 : f32
    %40 = vector.broadcast %cst_30 : f32 to vector<128x128xf32>
    %41 = arith.maximumf %39, %40 : vector<128x128xf32>
    %c5 = arith.constant 5 : index
    %c0_31 = arith.constant 0 : index
    %c0_32 = arith.constant 0 : index
    %42 = vector.load %arg2[%c5, %c0_31, %c0_32] : memref<7x128x128xf32, #tpu.memory_space<vmem>>, vector<1x128x128xf32>
    %43 = vector.shape_cast %42 : vector<1x128x128xf32> to vector<128x128xf32>
    %cst_33 = arith.constant dense<0.000000e+00> : vector<128x128xf32>
    %44 = tpu.matmul %41, %43, %cst_33 {dimension_numbers = #tpu.dot_dimension_numbers<[1], [0], [0], [1], [0, 0, 1, 1], [], []>} : vector<128x128xf32>, vector<128x128xf32>, vector<128x128xf32> -> vector<128x128xf32>
    %c5_34 = arith.constant 5 : index
    %c0_35 = arith.constant 0 : index
    %45 = vector.load %arg3[%c5_34, %c0_35] : memref<8x128xf32, #tpu.memory_space<vmem>>, vector<1x128xf32>
    %46 = vector.broadcast %45 : vector<1x128xf32> to vector<128x128xf32>
    %47 = arith.addf %44, %46 : vector<128x128xf32>
    %cst_36 = arith.constant 0.000000e+00 : f32
    %48 = vector.broadcast %cst_36 : f32 to vector<128x128xf32>
    %49 = arith.maximumf %47, %48 : vector<128x128xf32>
    %c6 = arith.constant 6 : index
    %c0_37 = arith.constant 0 : index
    %c0_38 = arith.constant 0 : index
    %50 = vector.load %arg2[%c6, %c0_37, %c0_38] : memref<7x128x128xf32, #tpu.memory_space<vmem>>, vector<1x128x128xf32>
    %51 = vector.shape_cast %50 : vector<1x128x128xf32> to vector<128x128xf32>
    %52 = vector.extract_strided_slice %51 {offsets = [0, 0], sizes = [8, 128], strides = [1, 1]} : vector<128x128xf32> to vector<8x128xf32>
    %cst_39 = arith.constant dense<0.000000e+00> : vector<8x128xf32>
    %53 = tpu.matmul %52, %49, %cst_39 {dimension_numbers = #tpu.dot_dimension_numbers<[1], [1], [0], [0], [0, 0, 1, 0], [], []>} : vector<8x128xf32>, vector<128x128xf32>, vector<8x128xf32> -> vector<8x128xf32>
    %c0_40 = arith.constant 0 : index
    %c0_41 = arith.constant 0 : index
    %54 = memref.load %arg4[%c0_40, %c0_41] : memref<1x1xf32, #tpu.memory_space<smem>>
    %55 = vector.broadcast %54 : f32 to vector<8x128xf32>
    %56 = arith.addf %53, %55 : vector<8x128xf32>
    %c0_42 = arith.constant 0 : index
    %c0_43 = arith.constant 0 : index
    %57 = vector.load %arg5[%c0_42, %c0_43] : memref<8x128xf32, #tpu.memory_space<vmem>>, vector<8x128xf32>
    tpu.vector_store %arg5[%c0_42, %c0_43], %56 {strides = array<i32>} : memref<8x128xf32, #tpu.memory_space<vmem>>, vector<8x128xf32>,
    return
  }
  func.func @transform_0(%arg0: i32) -> (i32, i32) {
    %c0_i32 = arith.constant 0 : i32
    %c0_i32_0 = arith.constant 0 : i32
    return %arg0, %c0_i32 : i32, i32
  }
  func.func @transform_1(%arg0: i32) -> (i32, i32, i32) {
    %c0_i32 = arith.constant 0 : i32
    %c0_i32_0 = arith.constant 0 : i32
    %c0_i32_1 = arith.constant 0 : i32
    %c0_i32_2 = arith.constant 0 : i32
    return %c0_i32, %c0_i32_0, %c0_i32_1 : i32, i32, i32
  }
  func.func @transform_2(%arg0: i32) -> (i32, i32) {
    %c0_i32 = arith.constant 0 : i32
    %c0_i32_0 = arith.constant 0 : i32
    %c0_i32_1 = arith.constant 0 : i32
    return %c0_i32, %c0_i32_0 : i32, i32
  }
  func.func @transform_3(%arg0: i32) -> (i32, i32) {
    %c0_i32 = arith.constant 0 : i32
    %c0_i32_0 = arith.constant 0 : i32
    %c0_i32_1 = arith.constant 0 : i32
    return %c0_i32, %c0_i32_0 : i32, i32
  }
  func.func @transform_4(%arg0: i32) -> (i32, i32) {
    %c0_i32 = arith.constant 0 : i32
    %c0_i32_0 = arith.constant 0 : i32
    return %c0_i32, %arg0 : i32, i32
  }
}

</mosaic_0001>

<llo_original>
// kernel: tpu_custom_call.1
$region0: #{tpu_custom_call.1}
  #allocation0 [shape = 'u32[]', space=smem, size = 0x4, offset = 0x4, fixed_abs, tag = 'smem constant byte address 0x4 - core index']
  #allocation1 [shape = 'u32[144,128]{1,0:T(1,128)}', space=vmem, size = 0x12000, scoped, tag = 'internal scratch']
  #allocation2 [shape = 'f32[1,1]{1,0:T(1,128)S(6)}', space=smem, size = 0x200, scoped, tag = 'scoped memory for tpu_custom_call.1']
  %s0 = inlined_call_operand.vmem [shape: f32[256,32], index: 0, kind: input, shape index: {}]
  %s1 = inlined_call_operand.hbm [shape: f32[7,128,128], index: 1, kind: input, shape index: {}]
  %s2 = inlined_call_operand.vmem [shape: f32[8,128], index: 2, kind: input, shape index: {}]
  %s3 = inlined_call_operand.<no memory space> [shape: f32[1,1], index: 3, kind: input, shape index: {}]
  %s4 = inlined_call_operand.hbm [shape: f32[8,256], index: 4, kind: output, shape index: {}]
  %s5 = sld [smem:[#allocation0]]
  $region53: #{tpu_custom_call.1} parent=0
    _
  %s7 = ssub.s32 1, %s5
  %s8 = scalar_select 0, %s7, %s5
  %9 = sst [smem:[#allocation2]] %s3
  $region1: #{tpu_custom_call.1} parent=0
    #allocation3 [shape = 'u8[458752]{0}', space=vmem, size = 0x70000, scoped, tag = 'input window, operand 1, single buffered']
    #allocation4 [shape = 's32[2]{0}', space=sflag, size = 0x8, scoped, tag = 'scoped memory for tpu_custom_call.1']
    #allocation5 [shape = 's32[2]{0}', space=sflag, size = 0x8, scoped, tag = 'scoped memory for tpu_custom_call.1']
    #allocation6 [shape = 'u8[8192]{0}', space=vmem, size = 0x2000, scoped, tag = 'output window, operand 0']
    %10 = vsyncpa [#allocation4], 0
    %11 = vsyncpa [#allocation5], 0
    %s12 = scalar_lea.sflag [#allocation5], 1
    %13 = vsyncpa %s12, 0
    loop: start=0, step=1, limit=4
    $region2: #{tpu_custom_call.1} parent=1 // loop_pre_header
      _
    $region3: #{tpu_custom_call.1} parent=1 // loop_header
      %s15 = sphi 0, %s19
      %p16 = scmp.ge.s32.totalorder %s15, 4
      %s25 = sphi 0, %s27
      %s28 = sphi 0, %s25
      %s29 = sphi 0, %s28
      %s45 = sphi 0, %s29
      %s49 = sphi 0, %s49
      %s51 = sphi 0, %s49
      %s52 = sphi 0, %s51
      %s66 = sphi 0, %s52
      %s70 = sphi 0, %s70
      %s72 = sphi 0, %s70
      %s73 = sphi 0, %s72
      %s87 = sphi 0, %s73
      %s91 = sphi 0, %s91
      %s93 = sphi 0, %s91
      %s94 = sphi 0, %s93
      %s108 = sphi 0, %s94
      %s114 = sphi 0, %s116
      %s117 = sphi 0, %s114
      %s118 = sphi 0, %s117
      %s134 = sphi 0, %s118
    $region4: #{tpu_custom_call.1} parent=1 // loop_header_branch
      %18 = sbr.rel (%p16) target = $region8
    $region5: #{tpu_custom_call.1} parent=1 // loop_body
      %s20 = ssub.s32 %s15, 1
      %s21 = ssub.s32 %s15, 2
      %s22 = sadd.s32 %s15, 1
      %s23 = ssub.s32 %s15, %s22
      %p24 = scmp.eq.s32.totalorder %s23, 0
      %s26 = sadd.s32 %s25, 1
      %s27 = scalar_select %p24, %s25, %s26
      %p30 = pneg %p24
      %p31 = scmp.eq.s32.totalorder %s15, 1
      %p32 = por %p30, %p31
      %p33 = scmp.ne.s32.totalorder %s25, %s28
      %p34 = scmp.eq.s32.totalorder %s15, 0
      %p35 = por %p33, %p34
      %p36 = scmp.ne.s32.totalorder %s25, %s28
      %p37 = scmp.eq.s32.totalorder %s20, 1
      %p38 = por %p36, %p37
      %p39 = scmp.ne.s32.totalorder %s28, %s29
      %p40 = scmp.eq.s32.totalorder %s20, 0
      %p41 = por %p39, %p40
      %p42 = scmp.ne.s32.totalorder %s28, %s29
      %p43 = scmp.eq.s32.totalorder %s21, 1
      %p44 = por %p42, %p43
      %p46 = scmp.ne.s32.totalorder %s29, %s45
      %p47 = scmp.eq.s32.totalorder %s21, 0
      %p48 = por %p46, %p47
      %s50 = sadd.s32 %s49, 1
      %p53 = scmp.eq.s32.totalorder %s15, 1
      %p54 = scmp.ne.s32.totalorder %s49, %s51
      %p55 = scmp.eq.s32.totalorder %s15, 0
      %p56 = por %p54, %p55
      %p57 = scmp.ne.s32.totalorder %s49, %s51
      %p58 = scmp.eq.s32.totalorder %s20, 1
      %p59 = por %p57, %p58
      %p60 = scmp.ne.s32.totalorder %s51, %s52
      %p61 = scmp.eq.s32.totalorder %s20, 0
      %p62 = por %p60, %p61
      %p63 = scmp.ne.s32.totalorder %s51, %s52
      %p64 = scmp.eq.s32.totalorder %s21, 1
      %p65 = por %p63, %p64
      %p67 = scmp.ne.s32.totalorder %s52, %s66
      %p68 = scmp.eq.s32.totalorder %s21, 0
      %p69 = por %p67, %p68
      %s71 = sadd.s32 %s70, 1
      %p74 = scmp.eq.s32.totalorder %s15, 1
      %p75 = scmp.ne.s32.totalorder %s70, %s72
      %p76 = scmp.eq.s32.totalorder %s15, 0
      %p77 = por %p75, %p76
      %p78 = scmp.ne.s32.totalorder %s70, %s72
      %p79 = scmp.eq.s32.totalorder %s20, 1
      %p80 = por %p78, %p79
      %p81 = scmp.ne.s32.totalorder %s72, %s73
      %p82 = scmp.eq.s32.totalorder %s20, 0
      %p83 = por %p81, %p82
      %p84 = scmp.ne.s32.totalorder %s72, %s73
      %p85 = scmp.eq.s32.totalorder %s21, 1
      %p86 = por %p84, %p85
      %p88 = scmp.ne.s32.totalorder %s73, %s87
      %p89 = scmp.eq.s32.totalorder %s21, 0
      %p90 = por %p88, %p89
      %s92 = sadd.s32 %s91, 1
      %p95 = scmp.eq.s32.totalorder %s15, 1
      %p96 = scmp.ne.s32.totalorder %s91, %s93
      %p97 = scmp.eq.s32.totalorder %s15, 0
      %p98 = por %p96, %p97
      %p99 = scmp.ne.s32.totalorder %s91, %s93
      %p100 = scmp.eq.s32.totalorder %s20, 1
      %p101 = por %p99, %p100
      %p102 = scmp.ne.s32.totalorder %s93, %s94
      %p103 = scmp.eq.s32.totalorder %s20, 0
      %p104 = por %p102, %p103
      %p105 = scmp.ne.s32.totalorder %s93, %s94
      %p106 = scmp.eq.s32.totalorder %s21, 1
      %p107 = por %p105, %p106
      %p109 = scmp.ne.s32.totalorder %s94, %s108
      %p110 = scmp.eq.s32.totalorder %s21, 0
      %p111 = por %p109, %p110
      %s112 = ssub.s32 %s15, %s22
      %p113 = scmp.eq.s32.totalorder %s112, 0
      %s115 = sadd.s32 %s114, 1
      %s116 = scalar_select %p113, %s114, %s115
      %p119 = pneg %p113
      %p120 = scmp.eq.s32.totalorder %s15, 1
      %p121 = por %p119, %p120
      %p122 = scmp.ne.s32.totalorder %s114, %s117
      %p123 = scmp.eq.s32.totalorder %s15, 0
      %p124 = por %p122, %p123
      %p125 = scmp.ne.s32.totalorder %s114, %s117
      %p126 = scmp.eq.s32.totalorder %s20, 1
      %p127 = por %p125, %p126
      %p128 = scmp.ne.s32.totalorder %s117, %s118
      %p129 = scmp.eq.s32.totalorder %s20, 0
      %p130 = por %p128, %p129
      %p131 = scmp.ne.s32.totalorder %s117, %s118
      %p132 = scmp.eq.s32.totalorder %s21, 1
      %p133 = por %p131, %p132
      %p135 = scmp.ne.s32.totalorder %s118, %s134
      %p136 = scmp.eq.s32.totalorder %s21, 0
      %p137 = por %p135, %p136
      %p138 = scmp.le.s32.totalorder 1, %s15
      %p139 = scmp.lt.s32.totalorder %s15, 3
      %p140 = pnand %p138, %p139
      %p141 = pneg %p140
      // Predicated region
      $region9: #{tpu_custom_call.1} parent=5 // pred_check
        _
      $region10: #{tpu_custom_call.1} parent=5 // pred_check_branch
        %143 = sbr.rel (%p140) target = $region12
      $region11: #{tpu_custom_call.1} parent=5 // pred_region
        %s144 = ssub.s32 %s15, 1
        // Predicated region
        $region13: #{tpu_custom_call.1} parent=11 // pred_check
          %p145 = pneg %p62
        $region14: #{tpu_custom_call.1} parent=11 // pred_check_branch
          %147 = sbr.rel (%p145) target = $region16
        $region15: #{tpu_custom_call.1} parent=11 // pred_region
          %s149 = ssub.s32 14336, 14336
          %150 = vsyncadd [#allocation4], %s149
          %s151 = sshll.u32 [#allocation3], 4
          %s152 = int_to_ptr.vmem [resolvable:$true] %s151
          %157 = dma.hbm_to_vmem [thread:$0]  %s1, 14336, %s152, [#allocation4], 128, 128, 8
        $region16: #{tpu_custom_call.1} parent=11 // pred_fallthru
          _
        // Predicated region
        $region17: #{tpu_custom_call.1} parent=11 // pred_check
          %p158 = pneg %p83
        $region18: #{tpu_custom_call.1} parent=11 // pred_check_branch
          %160 = sbr.rel (%p158) target = $region20
        $region19: #{tpu_custom_call.1} parent=11 // pred_region
          _
        $region20: #{tpu_custom_call.1} parent=11 // pred_fallthru
          _
        // Predicated region
        $region21: #{tpu_custom_call.1} parent=11 // pred_check
          %p161 = pneg %p104
        $region22: #{tpu_custom_call.1} parent=11 // pred_check_branch
          %163 = sbr.rel (%p161) target = $region24
        $region23: #{tpu_custom_call.1} parent=11 // pred_region
          _
        $region24: #{tpu_custom_call.1} parent=11 // pred_fallthru
          _
      $region12: #{tpu_custom_call.1} parent=5 // pred_fallthru
        _
      %p164 = scmp.lt.s32.totalorder %s15, 2
      // Predicated region
      $region25: #{tpu_custom_call.1} parent=5 // pred_check
        %p165 = pneg %p164
      $region26: #{tpu_custom_call.1} parent=5 // pred_check_branch
        %167 = sbr.rel (%p165) target = $region28
      $region27: #{tpu_custom_call.1} parent=5 // pred_region
        // Predicated region
        $region29: #{tpu_custom_call.1} parent=27 // pred_check
          %p168 = pneg %p35
        $region30: #{tpu_custom_call.1} parent=27 // pred_check_branch
          %170 = sbr.rel (%p168) target = $region32
        $region31: #{tpu_custom_call.1} parent=27 // pred_region
          %s171 = smul.u32 16, %s15
          %p172 = scmp.lt.s32.totalorder %s171, 31
          %s173 = scalar_select %p172, %s171, 31
          %s174 = smul.addr %s173, 8
          %s175 = scalar_lea.vmem %s0, %s174
          %s176 = smul.u32 16, %s15
        $region32: #{tpu_custom_call.1} parent=27 // pred_fallthru
          _
      $region28: #{tpu_custom_call.1} parent=5 // pred_fallthru
        _
      %p177 = scmp.le.s32.totalorder 1, %s15
      %p178 = scmp.lt.s32.totalorder %s15, 3
      %p179 = pnand %p177, %p178
      %p180 = pneg %p179
      // Predicated region
      $region33: #{tpu_custom_call.1} parent=5 // pred_check
        _
      $region34: #{tpu_custom_call.1} parent=5 // pred_check_branch
        %182 = sbr.rel (%p179) target = $region36
      $region35: #{tpu_custom_call.1} parent=5 // pred_region
        %s183 = ssub.s32 %s15, 1
        // Predicated region
        $region37: #{tpu_custom_call.1} parent=35 // pred_check
          %p184 = pneg %p62
        $region38: #{tpu_custom_call.1} parent=35 // pred_check_branch
          %186 = sbr.rel (%p184) target = $region40
        $region39: #{tpu_custom_call.1} parent=35 // pred_region
          %187 = dma.done [#allocation4], 14336
        $region40: #{tpu_custom_call.1} parent=35 // pred_fallthru
          _
        %s188 = smul.u32 16, %s20
        %p189 = scmp.lt.s32.totalorder %s188, 31
        %s190 = scalar_select %p189, %s188, 31
        %s191 = smul.addr %s190, 8
        %s192 = scalar_lea.vmem %s0, %s191
        %p193 = pneg %p41
        %p194 = pneg %p38
        %p195 = pneg %p62
        %p196 = pneg %p59
        %p197 = pneg %p83
        %p198 = pneg %p80
        %p199 = pneg %p104
        %p200 = pneg %p101
        %p201 = pneg %p130
        %p202 = pneg %p127
        %s203 = sand.u32 %s117, 1
        %s204 = scalar_lea.sflag [#allocation5], %s203
        %s205 = sand.u32 %s117, 1
        %s206 = smul.addr %s205, 8
        %s207 = scalar_lea.vmem [#allocation6], %s206
        %s208 = smul.u32 16, %s20
        %p209 = scmp.lt.s32.totalorder %s208, 31
        %s210 = scalar_select %p209, %s208, 31
        %s211 = smul.addr %s210, 8
        %s212 = scalar_lea.vmem %s0, %s211
        %s213 = smul.u32 16, %s20
        %v214 = vld [vmem:[%s212] sm:$0xff]
        %v215 = vld [vmem:[%s212 + $0x8] sm:$0xff]
        %v216 = vld [vmem:[%s212 + $0x10] sm:$0xff]
        %v217 = vld [vmem:[%s212 + $0x18] sm:$0xff]
        %v218 = vld [vmem:[%s212 + $0x20] sm:$0xff]
        %v219 = vld [vmem:[%s212 + $0x28] sm:$0xff]
        %v220 = vld [vmem:[%s212 + $0x30] sm:$0xff]
        %v221 = vld [vmem:[%s212 + $0x38] sm:$0xff]
        %v222 = vld [vmem:[%s212 + $0x40] sm:$0xff]
        %v223 = vld [vmem:[%s212 + $0x48] sm:$0xff]
        %v224 = vld [vmem:[%s212 + $0x50] sm:$0xff]
        %v225 = vld [vmem:[%s212 + $0x58] sm:$0xff]
        %v226 = vld [vmem:[%s212 + $0x60] sm:$0xff]
        %v227 = vld [vmem:[%s212 + $0x68] sm:$0xff]
        %v228 = vld [vmem:[%s212 + $0x70] sm:$0xff]
        %v229 = vld [vmem:[%s212 + $0x78] sm:$0xff]
        %v230 = vld [vmem:[#allocation3] sm:$0xff]
        %v231 = vld [vmem:[#allocation3 + $0x8] sm:$0xff]
        %v232 = vld [vmem:[#allocation3 + $0x10] sm:$0xff]
        %v233 = vld [vmem:[#allocation3 + $0x18] sm:$0xff]
        %v234 = vld [vmem:[%s2] sm:$0x1]
        %v235 = vlaneseq
        %v236 = vshrl.u32 %v235, 7
        %v237 = vsub.s32 0, %v236
        %v238 = vrot.slane %v234, %v237
        %vm239 = vcmask 261120
        %v241 = vsel %vm239, %v214, 0
        %v244 = vsel %vm239, %v215, 0
        %v247 = vsel %vm239, %v216, 0
        %v250 = vsel %vm239, %v217, 0
        %v253 = vsel %vm239, %v218, 0
        %v256 = vsel %vm239, %v219, 0
        %v259 = vsel %vm239, %v220, 0
        %v262 = vsel %vm239, %v221, 0
        %v265 = vsel %vm239, %v222, 0
        %v268 = vsel %vm239, %v223, 0
        %v271 = vsel %vm239, %v224, 0
        %v274 = vsel %vm239, %v225, 0
        %v277 = vsel %vm239, %v226, 0
        %v280 = vsel %vm239, %v227, 0
        %v283 = vsel %vm239, %v228, 0
        %v286 = vsel %vm239, %v229, 0
        %288 = vmatprep.subr.mxu0 0.0
        %289 = vmatpush1.msra.mxu0 %v230
        %290 = vmatprep.subr.mxu0 0.0
        %291 = vmatpush1.msra.mxu0 %v231
        %292 = vmatprep.subr.mxu0 0.0
        %293 = vmatpush1.msra.mxu0 %v232
        %294 = vmatprep.subr.mxu0 0.0
        %295 = vmatpush1.msra.mxu0 %v233
        %296 = vmatprep.subr.mxu0 0.0
        %297 = vmatpush1.msra.mxu0 0.0
        %298 = vmatprep.subr.mxu0 0.0
        %299 = vmatpush1.msra.mxu0 0.0
        %300 = vmatprep.subr.mxu0 0.0
        %301 = vmatpush1.msra.mxu0 0.0
        %302 = vmatprep.subr.mxu0 0.0
        %303 = vmatpush1.msra.mxu0 0.0
        %304 = vmatprep.subr.mxu0 0.0
        %305 = vmatpush1.msra.mxu0 0.0
        %306 = vmatprep.subr.mxu0 0.0
        %307 = vmatpush1.msra.mxu0 0.0
        %308 = vmatprep.subr.mxu0 0.0
        %309 = vmatpush1.msra.mxu0 0.0
        %310 = vmatprep.subr.mxu0 0.0
        %311 = vmatpush1.msra.mxu0 0.0
        %312 = vmatprep.subr.mxu0 0.0
        %313 = vmatpush1.msra.mxu0 0.0
        %314 = vmatprep.subr.mxu0 0.0
        %315 = vmatpush1.msra.mxu0 0.0
        %316 = vmatprep.subr.mxu0 0.0
        %317 = vmatpush1.msra.mxu0 0.0
        %318 = vmatprep.subr.mxu0 0.0
        %319 = vmatpush1.msra.mxu0 0.0
        %320 = vmatprep.subr.mxu0 0.0
        %321 = vmatpush1.msra.mxu0 0.0
        %322 = vmatprep.subr.mxu0 0.0
        %323 = vmatpush1.msra.mxu0 0.0
        %324 = vmatprep.subr.mxu0 0.0
        %325 = vmatpush1.msra.mxu0 0.0
        %326 = vmatprep.subr.mxu0 0.0
        %327 = vmatpush1.msra.mxu0 0.0
        %328 = vmatprep.subr.mxu0 0.0
        %329 = vmatpush1.msra.mxu0 0.0
        %330 = vmatprep.subr.mxu0 0.0
        %331 = vmatpush1.msra.mxu0 0.0
        %332 = vmatprep.subr.mxu0 0.0
        %333 = vmatpush1.msra.mxu0 0.0
        %334 = vmatprep.subr.mxu0 0.0
        %335 = vmatpush1.msra.mxu0 0.0
        %336 = vmatprep.subr.mxu0 0.0
        %337 = vmatpush1.msra.mxu0 0.0
        %338 = vmatprep.subr.mxu0 0.0
        %339 = vmatpush1.msra.mxu0 0.0
        %340 = vmatprep.subr.mxu0 0.0
        %341 = vmatpush1.msra.mxu0 0.0
        %342 = vmatprep.subr.mxu0 0.0
        %343 = vmatpush1.msra.mxu0 0.0
        %344 = vmatprep.subr.mxu0 0.0
        %345 = vmatpush1.msra.mxu0 0.0
        %346 = vmatprep.subr.mxu0 0.0
        %347 = vmatpush1.msra.mxu0 0.0
        %348 = vmatprep.subr.mxu0 0.0
        %349 = vmatpush1.msra.mxu0 0.0
        %350 = vmatprep.subr.mxu0 0.0
        %351 = vmatpush1.msra.mxu0 0.0
        %352 = vmatprep.mubr.f32.mxu0 0.0
        %353 = vmatmul.mubr.f32.gmra.mrb[0].mxu0 %v241
        %v354 = vpop.f32.mrb[0].mxu0
        %v355 = vadd.f32 %v238, %v354
        %v356 = vpop.f32.mrb[0].mxu0
        %357 = vmatprep.mubr.f32.mxu0 0.0
        %358 = vmatmul.mubr.f32.gmra.mrb[0].mxu0 %v244
        %v359 = vpop.f32.mrb[0].mxu0
        %v360 = vadd.f32 %v238, %v359
        %v361 = vpop.f32.mrb[0].mxu0
        %362 = vmatprep.mubr.f32.mxu0 0.0
        %363 = vmatmul.mubr.f32.gmra.mrb[0].mxu0 %v247
        %v364 = vpop.f32.mrb[0].mxu0
        %v365 = vadd.f32 %v238, %v364
        %v366 = vpop.f32.mrb[0].mxu0
        %367 = vmatprep.mubr.f32.mxu0 0.0
        %368 = vmatmul.mubr.f32.gmra.mrb[0].mxu0 %v250
        %v369 = vpop.f32.mrb[0].mxu0
        %v370 = vadd.f32 %v238, %v369
        %v371 = vpop.f32.mrb[0].mxu0
        %372 = vmatprep.mubr.f32.mxu0 0.0
        %373 = vmatmul.mubr.f32.gmra.mrb[0].mxu0 %v253
        %v374 = vpop.f32.mrb[0].mxu0
        %v375 = vadd.f32 %v238, %v374
        %v376 = vpop.f32.mrb[0].mxu0
        %377 = vmatprep.mubr.f32.mxu0 0.0
        %378 = vmatmul.mubr.f32.gmra.mrb[0].mxu0 %v256
        %v379 = vpop.f32.mrb[0].mxu0
        %v380 = vadd.f32 %v238, %v379
        %v381 = vpop.f32.mrb[0].mxu0
        %382 = vmatprep.mubr.f32.mxu0 0.0
        %383 = vmatmul.mubr.f32.gmra.mrb[0].mxu0 %v259
        %v384 = vpop.f32.mrb[0].mxu0
        %v385 = vadd.f32 %v238, %v384
        %v386 = vpop.f32.mrb[0].mxu0
        %387 = vmatprep.mubr.f32.mxu0 0.0
        %388 = vmatmul.mubr.f32.gmra.mrb[0].mxu0 %v262
        %v389 = vpop.f32.mrb[0].mxu0
        %v390 = vadd.f32 %v238, %v389
        %v391 = vpop.f32.mrb[0].mxu0
        %392 = vmatprep.mubr.f32.mxu0 0.0
        %393 = vmatmul.mubr.f32.gmra.mrb[0].mxu0 %v265
        %v394 = vpop.f32.mrb[0].mxu0
        %v395 = vadd.f32 %v238, %v394
        %v396 = vpop.f32.mrb[0].mxu0
        %397 = vmatprep.mubr.f32.mxu0 0.0
        %398 = vmatmul.mubr.f32.gmra.mrb[0].mxu0 %v268
        %v399 = vpop.f32.mrb[0].mxu0
        %v400 = vadd.f32 %v238, %v399
        %v401 = vpop.f32.mrb[0].mxu0
        %402 = vmatprep.mubr.f32.mxu0 0.0
        %403 = vmatmul.mubr.f32.gmra.mrb[0].mxu0 %v271
        %v404 = vpop.f32.mrb[0].mxu0
        %v405 = vadd.f32 %v238, %v404
        %v406 = vpop.f32.mrb[0].mxu0
        %407 = vmatprep.mubr.f32.mxu0 0.0
        %408 = vmatmul.mubr.f32.gmra.mrb[0].mxu0 %v274
        %v409 = vpop.f32.mrb[0].mxu0
        %v410 = vadd.f32 %v238, %v409
        %v411 = vpop.f32.mrb[0].mxu0
        %412 = vmatprep.mubr.f32.mxu0 0.0
        %413 = vmatmul.mubr.f32.gmra.mrb[0].mxu0 %v277
        %v414 = vpop.f32.mrb[0].mxu0
        %v415 = vadd.f32 %v238, %v414
        %v416 = vpop.f32.mrb[0].mxu0
        %417 = vmatprep.mubr.f32.mxu0 0.0
        %418 = vmatmul.mubr.f32.gmra.mrb[0].mxu0 %v280
        %v419 = vpop.f32.mrb[0].mxu0
        %v420 = vadd.f32 %v238, %v419
        %v421 = vpop.f32.mrb[0].mxu0
        %422 = vmatprep.mubr.f32.mxu0 0.0
        %423 = vmatmul.mubr.f32.gmra.mrb[0].mxu0 %v283
        %v424 = vpop.f32.mrb[0].mxu0
        %v425 = vadd.f32 %v238, %v424
        %v426 = vpop.f32.mrb[0].mxu0
        %427 = vmatprep.mubr.f32.mxu0 0.0
        %428 = vmatmul.mubr.f32.gmra.mrb[0].mxu0 %v286
        %v429 = vpop.f32.mrb[0].mxu0
        %v430 = vadd.f32 %v238, %v429
        %v431 = vpop.f32.mrb[0].mxu0
        %432 = vdwg.mxu0
        %v433 = vmax.f32 %v355, 0.0
        %v434 = vmax.f32 %v360, 0.0
        %v435 = vmax.f32 %v365, 0.0
        %v436 = vmax.f32 %v370, 0.0
        %v437 = vmax.f32 %v375, 0.0
        %v438 = vmax.f32 %v380, 0.0
        %v439 = vmax.f32 %v385, 0.0
        %v440 = vmax.f32 %v390, 0.0
        %v441 = vmax.f32 %v395, 0.0
        %v442 = vmax.f32 %v400, 0.0
        %v443 = vmax.f32 %v405, 0.0
        %v444 = vmax.f32 %v410, 0.0
        %v445 = vmax.f32 %v415, 0.0
        %v446 = vmax.f32 %v420, 0.0
        %v447 = vmax.f32 %v425, 0.0
        %v448 = vmax.f32 %v430, 0.0
        %s449 = scalar_lea.vmem [#allocation3], 128
        %v450 = vld [vmem:[%s449] sm:$0xff]
        %v451 = vld [vmem:[%s449 + $0x8] sm:$0xff]
        %v452 = vld [vmem:[%s449 + $0x10] sm:$0xff]
        %v453 = vld [vmem:[%s449 + $0x18] sm:$0xff]
        %v454 = vld [vmem:[%s449 + $0x20] sm:$0xff]
        %v455 = vld [vmem:[%s449 + $0x28] sm:$0xff]
        %v456 = vld [vmem:[%s449 + $0x30] sm:$0xff]
        %v457 = vld [vmem:[%s449 + $0x38] sm:$0xff]
        %v458 = vld [vmem:[%s449 + $0x40] sm:$0xff]
        %v459 = vld [vmem:[%s449 + $0x48] sm:$0xff]
        %v460 = vld [vmem:[%s449 + $0x50] sm:$0xff]
        %v461 = vld [vmem:[%s449 + $0x58] sm:$0xff]
        %v462 = vld [vmem:[%s449 + $0x60] sm:$0xff]
        %v463 = vld [vmem:[%s449 + $0x68] sm:$0xff]
        %v464 = vld [vmem:[%s449 + $0x70] sm:$0xff]
        %v465 = vld [vmem:[%s449 + $0x78] sm:$0xff]
        %v466 = vld [vmem:[%s2 + $0x1] sm:$0x1]
        %v467 = vlaneseq
        %v468 = vshrl.u32 %v467, 7
        %v469 = vsub.s32 0, %v468
        %v470 = vrot.slane %v466, %v469
        %471 = vmatprep.subr.mxu0 0.0
        %472 = vmatpush1.msra.mxu0 %v450
        %473 = vmatprep.subr.mxu0 0.0
        %474 = vmatpush1.msra.mxu0 %v451
        %475 = vmatprep.subr.mxu0 0.0
        %476 = vmatpush1.msra.mxu0 %v452
        %477 = vmatprep.subr.mxu0 0.0
        %478 = vmatpush1.msra.mxu0 %v453
        %479 = vmatprep.subr.mxu0 0.0
        %480 = vmatpush1.msra.mxu0 %v454
        %481 = vmatprep.subr.mxu0 0.0
        %482 = vmatpush1.msra.mxu0 %v455
        %483 = vmatprep.subr.mxu0 0.0
        %484 = vmatpush1.msra.mxu0 %v456
        %485 = vmatprep.subr.mxu0 0.0
        %486 = vmatpush1.msra.mxu0 %v457
        %487 = vmatprep.subr.mxu0 0.0
        %488 = vmatpush1.msra.mxu0 %v458
        %489 = vmatprep.subr.mxu0 0.0
        %490 = vmatpush1.msra.mxu0 %v459
        %491 = vmatprep.subr.mxu0 0.0
        %492 = vmatpush1.msra.mxu0 %v460
        %493 = vmatprep.subr.mxu0 0.0
        %494 = vmatpush1.msra.mxu0 %v461
        %495 = vmatprep.subr.mxu0 0.0
        %496 = vmatpush1.msra.mxu0 %v462
        %497 = vmatprep.subr.mxu0 0.0
        %498 = vmatpush1.msra.mxu0 %v463
        %499 = vmatprep.subr.mxu0 0.0
        %500 = vmatpush1.msra.mxu0 %v464
        %501 = vmatprep.subr.mxu0 0.0
        %502 = vmatpush1.msra.mxu0 %v465
        %503 = vmatprep.subr.mxu0 0.0
        %504 = vmatpush1.msra.mxu0 0.0
        %505 = vmatprep.subr.mxu0 0.0
        %506 = vmatpush1.msra.mxu0 0.0
        %507 = vmatprep.subr.mxu0 0.0
        %508 = vmatpush1.msra.mxu0 0.0
        %509 = vmatprep.subr.mxu0 0.0
        %510 = vmatpush1.msra.mxu0 0.0
        %511 = vmatprep.subr.mxu0 0.0
        %512 = vmatpush1.msra.mxu0 0.0
        %513 = vmatprep.subr.mxu0 0.0
        %514 = vmatpush1.msra.mxu0 0.0
        %515 = vmatprep.subr.mxu0 0.0
        %516 = vmatpush1.msra.mxu0 0.0
        %517 = vmatprep.subr.mxu0 0.0
        %518 = vmatpush1.msra.mxu0 0.0
        %519 = vmatprep.subr.mxu0 0.0
        %520 = vmatpush1.msra.mxu0 0.0
        %521 = vmatprep.subr.mxu0 0.0
        %522 = vmatpush1.msra.mxu0 0.0
        %523 = vmatprep.subr.mxu0 0.0
        %524 = vmatpush1.msra.mxu0 0.0
        %525 = vmatprep.subr.mxu0 0.0
        %526 = vmatpush1.msra.mxu0 0.0
        %527 = vmatprep.subr.mxu0 0.0
        %528 = vmatpush1.msra.mxu0 0.0
        %529 = vmatprep.subr.mxu0 0.0
        %530 = vmatpush1.msra.mxu0 0.0
        %531 = vmatprep.subr.mxu0 0.0
        %532 = vmatpush1.msra.mxu0 0.0
        %533 = vmatprep.subr.mxu0 0.0
        %534 = vmatpush1.msra.mxu0 0.0
        %535 = vmatprep.mubr.f32.mxu0 0.0
        %536 = vmatmul.mubr.f32.gmra.mrb[0].mxu0 %v433
        %v537 = vpop.f32.mrb[0].mxu0
        %v538 = vadd.f32 %v470, %v537
        %v539 = vpop.f32.mrb[0].mxu0
        %540 = vmatprep.mubr.f32.mxu0 0.0
        %541 = vmatmul.mubr.f32.gmra.mrb[0].mxu0 %v434
        %v542 = vpop.f32.mrb[0].mxu0
        %v543 = vadd.f32 %v470, %v542
        %v544 = vpop.f32.mrb[0].mxu0
        %545 = vmatprep.mubr.f32.mxu0 0.0
        %546 = vmatmul.mubr.f32.gmra.mrb[0].mxu0 %v435
        %v547 = vpop.f32.mrb[0].mxu0
        %v548 = vadd.f32 %v470, %v547
        %v549 = vpop.f32.mrb[0].mxu0
        %550 = vmatprep.mubr.f32.mxu0 0.0
        %551 = vmatmul.mubr.f32.gmra.mrb[0].mxu0 %v436
        %v552 = vpop.f32.mrb[0].mxu0
        %v553 = vadd.f32 %v470, %v552
        %v554 = vpop.f32.mrb[0].mxu0
        %555 = vmatprep.mubr.f32.mxu0 0.0
        %556 = vmatmul.mubr.f32.gmra.mrb[0].mxu0 %v437
        %v557 = vpop.f32.mrb[0].mxu0
        %v558 = vadd.f32 %v470, %v557
        %v559 = vpop.f32.mrb[0].mxu0
        %560 = vmatprep.mubr.f32.mxu0 0.0
        %561 = vmatmul.mubr.f32.gmra.mrb[0].mxu0 %v438
        %v562 = vpop.f32.mrb[0].mxu0
        %v563 = vadd.f32 %v470, %v562
        %v564 = vpop.f32.mrb[0].mxu0
        %565 = vmatprep.mubr.f32.mxu0 0.0
        %566 = vmatmul.mubr.f32.gmra.mrb[0].mxu0 %v439
        %v567 = vpop.f32.mrb[0].mxu0
        %v568 = vadd.f32 %v470, %v567
        %v569 = vpop.f32.mrb[0].mxu0
        %570 = vmatprep.mubr.f32.mxu0 0.0
        %571 = vmatmul.mubr.f32.gmra.mrb[0].mxu0 %v440
        %v572 = vpop.f32.mrb[0].mxu0
        %v573 = vadd.f32 %v470, %v572
        %v574 = vpop.f32.mrb[0].mxu0
        %575 = vmatprep.mubr.f32.mxu0 0.0
        %576 = vmatmul.mubr.f32.gmra.mrb[0].mxu0 %v441
        %v577 = vpop.f32.mrb[0].mxu0
        %v578 = vadd.f32 %v470, %v577
        %v579 = vpop.f32.mrb[0].mxu0
        %580 = vmatprep.mubr.f32.mxu0 0.0
        %581 = vmatmul.mubr.f32.gmra.mrb[0].mxu0 %v442
        %v582 = vpop.f32.mrb[0].mxu0
        %v583 = vadd.f32 %v470, %v582
        %v584 = vpop.f32.mrb[0].mxu0
        %585 = vmatprep.mubr.f32.mxu0 0.0
        %586 = vmatmul.mubr.f32.gmra.mrb[0].mxu0 %v443
        %v587 = vpop.f32.mrb[0].mxu0
        %v588 = vadd.f32 %v470, %v587
        %v589 = vpop.f32.mrb[0].mxu0
        %590 = vmatprep.mubr.f32.mxu0 0.0
        %591 = vmatmul.mubr.f32.gmra.mrb[0].mxu0 %v444
        %v592 = vpop.f32.mrb[0].mxu0
        %v593 = vadd.f32 %v470, %v592
        %v594 = vpop.f32.mrb[0].mxu0
        %595 = vmatprep.mubr.f32.mxu0 0.0
        %596 = vmatmul.mubr.f32.gmra.mrb[0].mxu0 %v445
        %v597 = vpop.f32.mrb[0].mxu0
        %v598 = vadd.f32 %v470, %v597
        %v599 = vpop.f32.mrb[0].mxu0
        %600 = vmatprep.mubr.f32.mxu0 0.0
        %601 = vmatmul.mubr.f32.gmra.mrb[0].mxu0 %v446
        %v602 = vpop.f32.mrb[0].mxu0
        %v603 = vadd.f32 %v470, %v602
        %v604 = vpop.f32.mrb[0].mxu0
        %605 = vmatprep.mubr.f32.mxu0 0.0
        %606 = vmatmul.mubr.f32.gmra.mrb[0].mxu0 %v447
        %v607 = vpop.f32.mrb[0].mxu0
        %v608 = vadd.f32 %v470, %v607
        %v609 = vpop.f32.mrb[0].mxu0
        %610 = vmatprep.mubr.f32.mxu0 0.0
        %611 = vmatmul.mubr.f32.gmra.mrb[0].mxu0 %v448
        %v612 = vpop.f32.mrb[0].mxu0
        %v613 = vadd.f32 %v470, %v612
        %v614 = vpop.f32.mrb[0].mxu0
        %615 = vdwg.mxu0
        %v616 = vmax.f32 %v538, 0.0
        %v617 = vmax.f32 %v543, 0.0
        %v618 = vmax.f32 %v548, 0.0
        %v619 = vmax.f32 %v553, 0.0
        %v620 = vmax.f32 %v558, 0.0
        %v621 = vmax.f32 %v563, 0.0
        %v622 = vmax.f32 %v568, 0.0
        %v623 = vmax.f32 %v573, 0.0
        %v624 = vmax.f32 %v578, 0.0
        %v625 = vmax.f32 %v583, 0.0
        %v626 = vmax.f32 %v588, 0.0
        %v627 = vmax.f32 %v593, 0.0
        %v628 = vmax.f32 %v598, 0.0
        %v629 = vmax.f32 %v603, 0.0
        %v630 = vmax.f32 %v608, 0.0
        %v631 = vmax.f32 %v613, 0.0
        %s632 = scalar_lea.vmem [#allocation3], 256
        %v633 = vld [vmem:[%s632] sm:$0xff]
        %v634 = vld [vmem:[%s632 + $0x8] sm:$0xff]
        %v635 = vld [vmem:[%s632 + $0x10] sm:$0xff]
        %v636 = vld [vmem:[%s632 + $0x18] sm:$0xff]
        %v637 = vld [vmem:[%s632 + $0x20] sm:$0xff]
        %v638 = vld [vmem:[%s632 + $0x28] sm:$0xff]
        %v639 = vld [vmem:[%s632 + $0x30] sm:$0xff]
        %v640 = vld [vmem:[%s632 + $0x38] sm:$0xff]
        %v641 = vld [vmem:[%s632 + $0x40] sm:$0xff]
        %v642 = vld [vmem:[%s632 + $0x48] sm:$0xff]
        %v643 = vld [vmem:[%s632 + $0x50] sm:$0xff]
        %v644 = vld [vmem:[%s632 + $0x58] sm:$0xff]
        %v645 = vld [vmem:[%s632 + $0x60] sm:$0xff]
        %v646 = vld [vmem:[%s632 + $0x68] sm:$0xff]
        %v647 = vld [vmem:[%s632 + $0x70] sm:$0xff]
        %v648 = vld [vmem:[%s632 + $0x78] sm:$0xff]
        %v649 = vld [vmem:[%s2 + $0x2] sm:$0x1]
        %v650 = vlaneseq
        %v651 = vshrl.u32 %v650, 7
        %v652 = vsub.s32 0, %v651
        %v653 = vrot.slane %v649, %v652
        %654 = vmatprep.subr.mxu0 0.0
        %655 = vmatpush1.msra.mxu0 %v633
        %656 = vmatprep.subr.mxu0 0.0
        %657 = vmatpush1.msra.mxu0 %v634
        %658 = vmatprep.subr.mxu0 0.0
        %659 = vmatpush1.msra.mxu0 %v635
        %660 = vmatprep.subr.mxu0 0.0
        %661 = vmatpush1.msra.mxu0 %v636
        %662 = vmatprep.subr.mxu0 0.0
        %663 = vmatpush1.msra.mxu0 %v637
        %664 = vmatprep.subr.mxu0 0.0
        %665 = vmatpush1.msra.mxu0 %v638
        %666 = vmatprep.subr.mxu0 0.0
        %667 = vmatpush1.msra.mxu0 %v639
        %668 = vmatprep.subr.mxu0 0.0
        %669 = vmatpush1.msra.mxu0 %v640
        %670 = vmatprep.subr.mxu0 0.0
        %671 = vmatpush1.msra.mxu0 %v641
        %672 = vmatprep.subr.mxu0 0.0
        %673 = vmatpush1.msra.mxu0 %v642
        %674 = vmatprep.subr.mxu0 0.0
        %675 = vmatpush1.msra.mxu0 %v643
        %676 = vmatprep.subr.mxu0 0.0
        %677 = vmatpush1.msra.mxu0 %v644
        %678 = vmatprep.subr.mxu0 0.0
        %679 = vmatpush1.msra.mxu0 %v645
        %680 = vmatprep.subr.mxu0 0.0
        %681 = vmatpush1.msra.mxu0 %v646
        %682 = vmatprep.subr.mxu0 0.0
        %683 = vmatpush1.msra.mxu0 %v647
        %684 = vmatprep.subr.mxu0 0.0
        %685 = vmatpush1.msra.mxu0 %v648
        %686 = vmatprep.subr.mxu0 0.0
        %687 = vmatpush1.msra.mxu0 0.0
        %688 = vmatprep.subr.mxu0 0.0
        %689 = vmatpush1.msra.mxu0 0.0
        %690 = vmatprep.subr.mxu0 0.0
        %691 = vmatpush1.msra.mxu0 0.0
        %692 = vmatprep.subr.mxu0 0.0
        %693 = vmatpush1.msra.mxu0 0.0
        %694 = vmatprep.subr.mxu0 0.0
        %695 = vmatpush1.msra.mxu0 0.0
        %696 = vmatprep.subr.mxu0 0.0
        %697 = vmatpush1.msra.mxu0 0.0
        %698 = vmatprep.subr.mxu0 0.0
        %699 = vmatpush1.msra.mxu0 0.0
        %700 = vmatprep.subr.mxu0 0.0
        %701 = vmatpush1.msra.mxu0 0.0
        %702 = vmatprep.subr.mxu0 0.0
        %703 = vmatpush1.msra.mxu0 0.0
        %704 = vmatprep.subr.mxu0 0.0
        %705 = vmatpush1.msra.mxu0 0.0
        %706 = vmatprep.subr.mxu0 0.0
        %707 = vmatpush1.msra.mxu0 0.0
        %708 = vmatprep.subr.mxu0 0.0
        %709 = vmatpush1.msra.mxu0 0.0
        %710 = vmatprep.subr.mxu0 0.0
        %711 = vmatpush1.msra.mxu0 0.0
        %712 = vmatprep.subr.mxu0 0.0
        %713 = vmatpush1.msra.mxu0 0.0
        %714 = vmatprep.subr.mxu0 0.0
        %715 = vmatpush1.msra.mxu0 0.0
        %716 = vmatprep.subr.mxu0 0.0
        %717 = vmatpush1.msra.mxu0 0.0
        %718 = vmatprep.mubr.f32.mxu0 0.0
        %719 = vmatmul.mubr.f32.gmra.mrb[0].mxu0 %v616
        %v720 = vpop.f32.mrb[0].mxu0
        %v721 = vadd.f32 %v653, %v720
        %v722 = vpop.f32.mrb[0].mxu0
        %723 = vmatprep.mubr.f32.mxu0 0.0
        %724 = vmatmul.mubr.f32.gmra.mrb[0].mxu0 %v617
        %v725 = vpop.f32.mrb[0].mxu0
        %v726 = vadd.f32 %v653, %v725
        %v727 = vpop.f32.mrb[0].mxu0
        %728 = vmatprep.mubr.f32.mxu0 0.0
        %729 = vmatmul.mubr.f32.gmra.mrb[0].mxu0 %v618
        %v730 = vpop.f32.mrb[0].mxu0
        %v731 = vadd.f32 %v653, %v730
        %v732 = vpop.f32.mrb[0].mxu0
        %733 = vmatprep.mubr.f32.mxu0 0.0
        %734 = vmatmul.mubr.f32.gmra.mrb[0].mxu0 %v619
        %v735 = vpop.f32.mrb[0].mxu0
        %v736 = vadd.f32 %v653, %v735
        %v737 = vpop.f32.mrb[0].mxu0
        %738 = vmatprep.mubr.f32.mxu0 0.0
        %739 = vmatmul.mubr.f32.gmra.mrb[0].mxu0 %v620
        %v740 = vpop.f32.mrb[0].mxu0
        %v741 = vadd.f32 %v653, %v740
        %v742 = vpop.f32.mrb[0].mxu0
        %743 = vmatprep.mubr.f32.mxu0 0.0
        %744 = vmatmul.mubr.f32.gmra.mrb[0].mxu0 %v621
        %v745 = vpop.f32.mrb[0].mxu0
        %v746 = vadd.f32 %v653, %v745
        %v747 = vpop.f32.mrb[0].mxu0
        %748 = vmatprep.mubr.f32.mxu0 0.0
        %749 = vmatmul.mubr.f32.gmra.mrb[0].mxu0 %v622
        %v750 = vpop.f32.mrb[0].mxu0
        %v751 = vadd.f32 %v653, %v750
        %v752 = vpop.f32.mrb[0].mxu0
        %753 = vmatprep.mubr.f32.mxu0 0.0
        %754 = vmatmul.mubr.f32.gmra.mrb[0].mxu0 %v623
        %v755 = vpop.f32.mrb[0].mxu0
        %v756 = vadd.f32 %v653, %v755
        %v757 = vpop.f32.mrb[0].mxu0
        %758 = vmatprep.mubr.f32.mxu0 0.0
        %759 = vmatmul.mubr.f32.gmra.mrb[0].mxu0 %v624
        %v760 = vpop.f32.mrb[0].mxu0
        %v761 = vadd.f32 %v653, %v760
        %v762 = vpop.f32.mrb[0].mxu0
        %763 = vmatprep.mubr.f32.mxu0 0.0
        %764 = vmatmul.mubr.f32.gmra.mrb[0].mxu0 %v625
        %v765 = vpop.f32.mrb[0].mxu0
        %v766 = vadd.f32 %v653, %v765
        %v767 = vpop.f32.mrb[0].mxu0
        %768 = vmatprep.mubr.f32.mxu0 0.0
        %769 = vmatmul.mubr.f32.gmra.mrb[0].mxu0 %v626
        %v770 = vpop.f32.mrb[0].mxu0
        %v771 = vadd.f32 %v653, %v770
        %v772 = vpop.f32.mrb[0].mxu0
        %773 = vmatprep.mubr.f32.mxu0 0.0
        %774 = vmatmul.mubr.f32.gmra.mrb[0].mxu0 %v627
        %v775 = vpop.f32.mrb[0].mxu0
        %v776 = vadd.f32 %v653, %v775
        %v777 = vpop.f32.mrb[0].mxu0
        %778 = vmatprep.mubr.f32.mxu0 0.0
        %779 = vmatmul.mubr.f32.gmra.mrb[0].mxu0 %v628
        %v780 = vpop.f32.mrb[0].mxu0
        %v781 = vadd.f32 %v653, %v780
        %v782 = vpop.f32.mrb[0].mxu0
        %783 = vmatprep.mubr.f32.mxu0 0.0
        %784 = vmatmul.mubr.f32.gmra.mrb[0].mxu0 %v629
        %v785 = vpop.f32.mrb[0].mxu0
        %v786 = vadd.f32 %v653, %v785
        %v787 = vpop.f32.mrb[0].mxu0
        %788 = vmatprep.mubr.f32.mxu0 0.0
        %789 = vmatmul.mubr.f32.gmra.mrb[0].mxu0 %v630
        %v790 = vpop.f32.mrb[0].mxu0
        %v791 = vadd.f32 %v653, %v790
        %v792 = vpop.f32.mrb[0].mxu0
        %793 = vmatprep.mubr.f32.mxu0 0.0
        %794 = vmatmul.mubr.f32.gmra.mrb[0].mxu0 %v631
        %v795 = vpop.f32.mrb[0].mxu0
        %v796 = vadd.f32 %v653, %v795
        %v797 = vpop.f32.mrb[0].mxu0
        %798 = vdwg.mxu0
        %v799 = vmax.f32 %v721, 0.0
        %v800 = vmax.f32 %v726, 0.0
        %v801 = vmax.f32 %v731, 0.0
        %v802 = vmax.f32 %v736, 0.0
        %v803 = vmax.f32 %v741, 0.0
        %v804 = vmax.f32 %v746, 0.0
        %v805 = vmax.f32 %v751, 0.0
        %v806 = vmax.f32 %v756, 0.0
        %v807 = vmax.f32 %v761, 0.0
        %v808 = vmax.f32 %v766, 0.0
        %v809 = vmax.f32 %v771, 0.0
        %v810 = vmax.f32 %v776, 0.0
        %v811 = vmax.f32 %v781, 0.0
        %v812 = vmax.f32 %v786, 0.0
        %v813 = vmax.f32 %v791, 0.0
        %v814 = vmax.f32 %v796, 0.0
        %s815 = scalar_lea.vmem [#allocation3], 384
        %v816 = vld [vmem:[%s815] sm:$0xff]
        %v817 = vld [vmem:[%s815 + $0x8] sm:$0xff]
        %v818 = vld [vmem:[%s815 + $0x10] sm:$0xff]
        %v819 = vld [vmem:[%s815 + $0x18] sm:$0xff]
        %v820 = vld [vmem:[%s815 + $0x20] sm:$0xff]
        %v821 = vld [vmem:[%s815 + $0x28] sm:$0xff]
        %v822 = vld [vmem:[%s815 + $0x30] sm:$0xff]
        %v823 = vld [vmem:[%s815 + $0x38] sm:$0xff]
        %v824 = vld [vmem:[%s815 + $0x40] sm:$0xff]
        %v825 = vld [vmem:[%s815 + $0x48] sm:$0xff]
        %v826 = vld [vmem:[%s815 + $0x50] sm:$0xff]
        %v827 = vld [vmem:[%s815 + $0x58] sm:$0xff]
        %v828 = vld [vmem:[%s815 + $0x60] sm:$0xff]
        %v829 = vld [vmem:[%s815 + $0x68] sm:$0xff]
        %v830 = vld [vmem:[%s815 + $0x70] sm:$0xff]
        %v831 = vld [vmem:[%s815 + $0x78] sm:$0xff]
        %v832 = vld [vmem:[%s2 + $0x3] sm:$0x1]
        %v833 = vlaneseq
        %v834 = vshrl.u32 %v833, 7
        %v835 = vsub.s32 0, %v834
        %v836 = vrot.slane %v832, %v835
        %837 = vmatprep.subr.mxu0 0.0
        %838 = vmatpush1.msra.mxu0 %v816
        %839 = vmatprep.subr.mxu0 0.0
        %840 = vmatpush1.msra.mxu0 %v817
        %841 = vmatprep.subr.mxu0 0.0
        %842 = vmatpush1.msra.mxu0 %v818
        %843 = vmatprep.subr.mxu0 0.0
        %844 = vmatpush1.msra.mxu0 %v819
        %845 = vmatprep.subr.mxu0 0.0
        %846 = vmatpush1.msra.mxu0 %v820
        %847 = vmatprep.subr.mxu0 0.0
        %848 = vmatpush1.msra.mxu0 %v821
        %849 = vmatprep.subr.mxu0 0.0
        %850 = vmatpush1.msra.mxu0 %v822
        %851 = vmatprep.subr.mxu0 0.0
        %852 = vmatpush1.msra.mxu0 %v823
        %853 = vmatprep.subr.mxu0 0.0
        %854 = vmatpush1.msra.mxu0 %v824
        %855 = vmatprep.subr.mxu0 0.0
        %856 = vmatpush1.msra.mxu0 %v825
        %857 = vmatprep.subr.mxu0 0.0
        %858 = vmatpush1.msra.mxu0 %v826
        %859 = vmatprep.subr.mxu0 0.0
        %860 = vmatpush1.msra.mxu0 %v827
        %861 = vmatprep.subr.mxu0 0.0
        %862 = vmatpush1.msra.mxu0 %v828
        %863 = vmatprep.subr.mxu0 0.0
        %864 = vmatpush1.msra.mxu0 %v829
        %865 = vmatprep.subr.mxu0 0.0
        %866 = vmatpush1.msra.mxu0 %v830
        %867 = vmatprep.subr.mxu0 0.0
        %868 = vmatpush1.msra.mxu0 %v831
        %869 = vmatprep.subr.mxu0 0.0
        %870 = vmatpush1.msra.mxu0 0.0
        %871 = vmatprep.subr.mxu0 0.0
        %872 = vmatpush1.msra.mxu0 0.0
        %873 = vmatprep.subr.mxu0 0.0
        %874 = vmatpush1.msra.mxu0 0.0
        %875 = vmatprep.subr.mxu0 0.0
        %876 = vmatpush1.msra.mxu0 0.0
        %877 = vmatprep.subr.mxu0 0.0
        %878 = vmatpush1.msra.mxu0 0.0
        %879 = vmatprep.subr.mxu0 0.0
        %880 = vmatpush1.msra.mxu0 0.0
        %881 = vmatprep.subr.mxu0 0.0
        %882 = vmatpush1.msra.mxu0 0.0
        %883 = vmatprep.subr.mxu0 0.0
        %884 = vmatpush1.msra.mxu0 0.0
        %885 = vmatprep.subr.mxu0 0.0
        %886 = vmatpush1.msra.mxu0 0.0
        %887 = vmatprep.subr.mxu0 0.0
        %888 = vmatpush1.msra.mxu0 0.0
        %889 = vmatprep.subr.mxu0 0.0
        %890 = vmatpush1.msra.mxu0 0.0
        %891 = vmatprep.subr.mxu0 0.0
        %892 = vmatpush1.msra.mxu0 0.0
        %893 = vmatprep.subr.mxu0 0.0
        %894 = vmatpush1.msra.mxu0 0.0
        %895 = vmatprep.subr.mxu0 0.0
        %896 = vmatpush1.msra.mxu0 0.0
        %897 = vmatprep.subr.mxu0 0.0
        %898 = vmatpush1.msra.mxu0 0.0
        %899 = vmatprep.subr.mxu0 0.0
        %900 = vmatpush1.msra.mxu0 0.0
        %901 = vmatprep.mubr.f32.mxu0 0.0
        %902 = vmatmul.mubr.f32.gmra.mrb[0].mxu0 %v799
        %v903 = vpop.f32.mrb[0].mxu0
        %v904 = vadd.f32 %v836, %v903
        %v905 = vpop.f32.mrb[0].mxu0
        %906 = vmatprep.mubr.f32.mxu0 0.0
        %907 = vmatmul.mubr.f32.gmra.mrb[0].mxu0 %v800
        %v908 = vpop.f32.mrb[0].mxu0
        %v909 = vadd.f32 %v836, %v908
        %v910 = vpop.f32.mrb[0].mxu0
        %911 = vmatprep.mubr.f32.mxu0 0.0
        %912 = vmatmul.mubr.f32.gmra.mrb[0].mxu0 %v801
        %v913 = vpop.f32.mrb[0].mxu0
        %v914 = vadd.f32 %v836, %v913
        %v915 = vpop.f32.mrb[0].mxu0
        %916 = vmatprep.mubr.f32.mxu0 0.0
        %917 = vmatmul.mubr.f32.gmra.mrb[0].mxu0 %v802
        %v918 = vpop.f32.mrb[0].mxu0
        %v919 = vadd.f32 %v836, %v918
        %v920 = vpop.f32.mrb[0].mxu0
        %921 = vmatprep.mubr.f32.mxu0 0.0
        %922 = vmatmul.mubr.f32.gmra.mrb[0].mxu0 %v803
        %v923 = vpop.f32.mrb[0].mxu0
        %v924 = vadd.f32 %v836, %v923
        %v925 = vpop.f32.mrb[0].mxu0
        %926 = vmatprep.mubr.f32.mxu0 0.0
        %927 = vmatmul.mubr.f32.gmra.mrb[0].mxu0 %v804
        %v928 = vpop.f32.mrb[0].mxu0
        %v929 = vadd.f32 %v836, %v928
        %v930 = vpop.f32.mrb[0].mxu0
        %931 = vmatprep.mubr.f32.mxu0 0.0
        %932 = vmatmul.mubr.f32.gmra.mrb[0].mxu0 %v805
        %v933 = vpop.f32.mrb[0].mxu0
        %v934 = vadd.f32 %v836, %v933
        %v935 = vpop.f32.mrb[0].mxu0
        %936 = vmatprep.mubr.f32.mxu0 0.0
        %937 = vmatmul.mubr.f32.gmra.mrb[0].mxu0 %v806
        %v938 = vpop.f32.mrb[0].mxu0
        %v939 = vadd.f32 %v836, %v938
        %v940 = vpop.f32.mrb[0].mxu0
        %941 = vmatprep.mubr.f32.mxu0 0.0
        %942 = vmatmul.mubr.f32.gmra.mrb[0].mxu0 %v807
        %v943 = vpop.f32.mrb[0].mxu0
        %v944 = vadd.f32 %v836, %v943
        %v945 = vpop.f32.mrb[0].mxu0
        %946 = vmatprep.mubr.f32.mxu0 0.0
        %947 = vmatmul.mubr.f32.gmra.mrb[0].mxu0 %v808
        %v948 = vpop.f32.mrb[0].mxu0
        %v949 = vadd.f32 %v836, %v948
        %v950 = vpop.f32.mrb[0].mxu0
        %951 = vmatprep.mubr.f32.mxu0 0.0
        %952 = vmatmul.mubr.f32.gmra.mrb[0].mxu0 %v809
        %v953 = vpop.f32.mrb[0].mxu0
        %v954 = vadd.f32 %v836, %v953
        %v955 = vpop.f32.mrb[0].mxu0
        %956 = vmatprep.mubr.f32.mxu0 0.0
        %957 = vmatmul.mubr.f32.gmra.mrb[0].mxu0 %v810
        %v958 = vpop.f32.mrb[0].mxu0
        %v959 = vadd.f32 %v836, %v958
        %v960 = vpop.f32.mrb[0].mxu0
        %961 = vmatprep.mubr.f32.mxu0 0.0
        %962 = vmatmul.mubr.f32.gmra.mrb[0].mxu0 %v811
        %v963 = vpop.f32.mrb[0].mxu0
        %v964 = vadd.f32 %v836, %v963
        %v965 = vpop.f32.mrb[0].mxu0
        %966 = vmatprep.mubr.f32.mxu0 0.0
        %967 = vmatmul.mubr.f32.gmra.mrb[0].mxu0 %v812
        %v968 = vpop.f32.mrb[0].mxu0
        %v969 = vadd.f32 %v836, %v968
        %v970 = vpop.f32.mrb[0].mxu0
        %971 = vmatprep.mubr.f32.mxu0 0.0
        %972 = vmatmul.mubr.f32.gmra.mrb[0].mxu0 %v813
        %v973 = vpop.f32.mrb[0].mxu0
        %v974 = vadd.f32 %v836, %v973
        %v975 = vpop.f32.mrb[0].mxu0
        %976 = vmatprep.mubr.f32.mxu0 0.0
        %977 = vmatmul.mubr.f32.gmra.mrb[0].mxu0 %v814
        %v978 = vpop.f32.mrb[0].mxu0
        %v979 = vadd.f32 %v836, %v978
        %v980 = vpop.f32.mrb[0].mxu0
        %981 = vdwg.mxu0
        %v982 = vmax.f32 %v904, 0.0
        %v983 = vmax.f32 %v909, 0.0
        %v984 = vmax.f32 %v914, 0.0
        %v985 = vmax.f32 %v919, 0.0
        %v986 = vmax.f32 %v924, 0.0
        %v987 = vmax.f32 %v929, 0.0
        %v988 = vmax.f32 %v934, 0.0
        %v989 = vmax.f32 %v939, 0.0
        %v990 = vmax.f32 %v944, 0.0
        %v991 = vmax.f32 %v949, 0.0
        %v992 = vmax.f32 %v954, 0.0
        %v993 = vmax.f32 %v959, 0.0
        %v994 = vmax.f32 %v964, 0.0
        %v995 = vmax.f32 %v969, 0.0
        %v996 = vmax.f32 %v974, 0.0
        %v997 = vmax.f32 %v979, 0.0
        %s998 = scalar_lea.vmem [#allocation3], 512
        %v999 = vld [vmem:[%s998] sm:$0xff]
        %v1000 = vld [vmem:[%s998 + $0x8] sm:$0xff]
        %v1001 = vld [vmem:[%s998 + $0x10] sm:$0xff]
        %v1002 = vld [vmem:[%s998 + $0x18] sm:$0xff]
        %v1003 = vld [vmem:[%s998 + $0x20] sm:$0xff]
        %v1004 = vld [vmem:[%s998 + $0x28] sm:$0xff]
        %v1005 = vld [vmem:[%s998 + $0x30] sm:$0xff]
        %v1006 = vld [vmem:[%s998 + $0x38] sm:$0xff]
        %v1007 = vld [vmem:[%s998 + $0x40] sm:$0xff]
        %v1008 = vld [vmem:[%s998 + $0x48] sm:$0xff]
        %v1009 = vld [vmem:[%s998 + $0x50] sm:$0xff]
        %v1010 = vld [vmem:[%s998 + $0x58] sm:$0xff]
        %v1011 = vld [vmem:[%s998 + $0x60] sm:$0xff]
        %v1012 = vld [vmem:[%s998 + $0x68] sm:$0xff]
        %v1013 = vld [vmem:[%s998 + $0x70] sm:$0xff]
        %v1014 = vld [vmem:[%s998 + $0x78] sm:$0xff]
        %v1015 = vld [vmem:[%s2 + $0x4] sm:$0x1]
        %v1016 = vlaneseq
        %v1017 = vshrl.u32 %v1016, 7
        %v1018 = vsub.s32 0, %v1017
        %v1019 = vrot.slane %v1015, %v1018
        %1020 = vmatprep.subr.mxu0 0.0
        %1021 = vmatpush1.msra.mxu0 %v999
        %1022 = vmatprep.subr.mxu0 0.0
        %1023 = vmatpush1.msra.mxu0 %v1000
        %1024 = vmatprep.subr.mxu0 0.0
        %1025 = vmatpush1.msra.mxu0 %v1001
        %1026 = vmatprep.subr.mxu0 0.0
        %1027 = vmatpush1.msra.mxu0 %v1002
        %1028 = vmatprep.subr.mxu0 0.0
        %1029 = vmatpush1.msra.mxu0 %v1003
        %1030 = vmatprep.subr.mxu0 0.0
        %1031 = vmatpush1.msra.mxu0 %v1004
        %1032 = vmatprep.subr.mxu0 0.0
        %1033 = vmatpush1.msra.mxu0 %v1005
        %1034 = vmatprep.subr.mxu0 0.0
        %1035 = vmatpush1.msra.mxu0 %v1006
        %1036 = vmatprep.subr.mxu0 0.0
        %1037 = vmatpush1.msra.mxu0 %v1007
        %1038 = vmatprep.subr.mxu0 0.0
        %1039 = vmatpush1.msra.mxu0 %v1008
        %1040 = vmatprep.subr.mxu0 0.0
        %1041 = vmatpush1.msra.mxu0 %v1009
        %1042 = vmatprep.subr.mxu0 0.0
        %1043 = vmatpush1.msra.mxu0 %v1010
        %1044 = vmatprep.subr.mxu0 0.0
        %1045 = vmatpush1.msra.mxu0 %v1011
        %1046 = vmatprep.subr.mxu0 0.0
        %1047 = vmatpush1.msra.mxu0 %v1012
        %1048 = vmatprep.subr.mxu0 0.0
        %1049 = vmatpush1.msra.mxu0 %v1013
        %1050 = vmatprep.subr.mxu0 0.0
        %1051 = vmatpush1.msra.mxu0 %v1014
        %1052 = vmatprep.subr.mxu0 0.0
        %1053 = vmatpush1.msra.mxu0 0.0
        %1054 = vmatprep.subr.mxu0 0.0
        %1055 = vmatpush1.msra.mxu0 0.0
        %1056 = vmatprep.subr.mxu0 0.0
        %1057 = vmatpush1.msra.mxu0 0.0
        %1058 = vmatprep.subr.mxu0 0.0
        %1059 = vmatpush1.msra.mxu0 0.0
        %1060 = vmatprep.subr.mxu0 0.0
        %1061 = vmatpush1.msra.mxu0 0.0
        %1062 = vmatprep.subr.mxu0 0.0
        %1063 = vmatpush1.msra.mxu0 0.0
        %1064 = vmatprep.subr.mxu0 0.0
        %1065 = vmatpush1.msra.mxu0 0.0
        %1066 = vmatprep.subr.mxu0 0.0
        %1067 = vmatpush1.msra.mxu0 0.0
        %1068 = vmatprep.subr.mxu0 0.0
        %1069 = vmatpush1.msra.mxu0 0.0
        %1070 = vmatprep.subr.mxu0 0.0
        %1071 = vmatpush1.msra.mxu0 0.0
        %1072 = vmatprep.subr.mxu0 0.0
        %1073 = vmatpush1.msra.mxu0 0.0
        %1074 = vmatprep.subr.mxu0 0.0
        %1075 = vmatpush1.msra.mxu0 0.0
        %1076 = vmatprep.subr.mxu0 0.0
        %1077 = vmatpush1.msra.mxu0 0.0
        %1078 = vmatprep.subr.mxu0 0.0
        %1079 = vmatpush1.msra.mxu0 0.0
        %1080 = vmatprep.subr.mxu0 0.0
        %1081 = vmatpush1.msra.mxu0 0.0
        %1082 = vmatprep.subr.mxu0 0.0
        %1083 = vmatpush1.msra.mxu0 0.0
        %1084 = vmatprep.mubr.f32.mxu0 0.0
        %1085 = vmatmul.mubr.f32.gmra.mrb[0].mxu0 %v982
        %v1086 = vpop.f32.mrb[0].mxu0
        %v1087 = vadd.f32 %v1019, %v1086
        %v1088 = vpop.f32.mrb[0].mxu0
        %1089 = vmatprep.mubr.f32.mxu0 0.0
        %1090 = vmatmul.mubr.f32.gmra.mrb[0].mxu0 %v983
        %v1091 = vpop.f32.mrb[0].mxu0
        %v1092 = vadd.f32 %v1019, %v1091
        %v1093 = vpop.f32.mrb[0].mxu0
        %1094 = vmatprep.mubr.f32.mxu0 0.0
        %1095 = vmatmul.mubr.f32.gmra.mrb[0].mxu0 %v984
        %v1096 = vpop.f32.mrb[0].mxu0
        %v1097 = vadd.f32 %v1019, %v1096
        %v1098 = vpop.f32.mrb[0].mxu0
        %1099 = vmatprep.mubr.f32.mxu0 0.0
        %1100 = vmatmul.mubr.f32.gmra.mrb[0].mxu0 %v985
        %v1101 = vpop.f32.mrb[0].mxu0
        %v1102 = vadd.f32 %v1019, %v1101
        %v1103 = vpop.f32.mrb[0].mxu0
        %1104 = vmatprep.mubr.f32.mxu0 0.0
        %1105 = vmatmul.mubr.f32.gmra.mrb[0].mxu0 %v986
        %v1106 = vpop.f32.mrb[0].mxu0
        %v1107 = vadd.f32 %v1019, %v1106
        %v1108 = vpop.f32.mrb[0].mxu0
        %1109 = vmatprep.mubr.f32.mxu0 0.0
        %1110 = vmatmul.mubr.f32.gmra.mrb[0].mxu0 %v987
        %v1111 = vpop.f32.mrb[0].mxu0
        %v1112 = vadd.f32 %v1019, %v1111
        %v1113 = vpop.f32.mrb[0].mxu0
        %1114 = vmatprep.mubr.f32.mxu0 0.0
        %1115 = vmatmul.mubr.f32.gmra.mrb[0].mxu0 %v988
        %v1116 = vpop.f32.mrb[0].mxu0
        %v1117 = vadd.f32 %v1019, %v1116
        %v1118 = vpop.f32.mrb[0].mxu0
        %1119 = vmatprep.mubr.f32.mxu0 0.0
        %1120 = vmatmul.mubr.f32.gmra.mrb[0].mxu0 %v989
        %v1121 = vpop.f32.mrb[0].mxu0
        %v1122 = vadd.f32 %v1019, %v1121
        %v1123 = vpop.f32.mrb[0].mxu0
        %1124 = vmatprep.mubr.f32.mxu0 0.0
        %1125 = vmatmul.mubr.f32.gmra.mrb[0].mxu0 %v990
        %v1126 = vpop.f32.mrb[0].mxu0
        %v1127 = vadd.f32 %v1019, %v1126
        %v1128 = vpop.f32.mrb[0].mxu0
        %1129 = vmatprep.mubr.f32.mxu0 0.0
        %1130 = vmatmul.mubr.f32.gmra.mrb[0].mxu0 %v991
        %v1131 = vpop.f32.mrb[0].mxu0
        %v1132 = vadd.f32 %v1019, %v1131
        %v1133 = vpop.f32.mrb[0].mxu0
        %1134 = vmatprep.mubr.f32.mxu0 0.0
        %1135 = vmatmul.mubr.f32.gmra.mrb[0].mxu0 %v992
        %v1136 = vpop.f32.mrb[0].mxu0
        %v1137 = vadd.f32 %v1019, %v1136
        %v1138 = vpop.f32.mrb[0].mxu0
        %1139 = vmatprep.mubr.f32.mxu0 0.0
        %1140 = vmatmul.mubr.f32.gmra.mrb[0].mxu0 %v993
        %v1141 = vpop.f32.mrb[0].mxu0
        %v1142 = vadd.f32 %v1019, %v1141
        %v1143 = vpop.f32.mrb[0].mxu0
        %1144 = vmatprep.mubr.f32.mxu0 0.0
        %1145 = vmatmul.mubr.f32.gmra.mrb[0].mxu0 %v994
        %v1146 = vpop.f32.mrb[0].mxu0
        %v1147 = vadd.f32 %v1019, %v1146
        %v1148 = vpop.f32.mrb[0].mxu0
        %1149 = vmatprep.mubr.f32.mxu0 0.0
        %1150 = vmatmul.mubr.f32.gmra.mrb[0].mxu0 %v995
        %v1151 = vpop.f32.mrb[0].mxu0
        %v1152 = vadd.f32 %v1019, %v1151
        %v1153 = vpop.f32.mrb[0].mxu0
        %1154 = vmatprep.mubr.f32.mxu0 0.0
        %1155 = vmatmul.mubr.f32.gmra.mrb[0].mxu0 %v996
        %v1156 = vpop.f32.mrb[0].mxu0
        %v1157 = vadd.f32 %v1019, %v1156
        %v1158 = vpop.f32.mrb[0].mxu0
        %1159 = vmatprep.mubr.f32.mxu0 0.0
        %1160 = vmatmul.mubr.f32.gmra.mrb[0].mxu0 %v997
        %v1161 = vpop.f32.mrb[0].mxu0
        %v1162 = vadd.f32 %v1019, %v1161
        %v1163 = vpop.f32.mrb[0].mxu0
        %1164 = vdwg.mxu0
        %v1165 = vmax.f32 %v1087, 0.0
        %v1166 = vmax.f32 %v1092, 0.0
        %v1167 = vmax.f32 %v1097, 0.0
        %v1168 = vmax.f32 %v1102, 0.0
        %v1169 = vmax.f32 %v1107, 0.0
        %v1170 = vmax.f32 %v1112, 0.0
        %v1171 = vmax.f32 %v1117, 0.0
        %v1172 = vmax.f32 %v1122, 0.0
        %v1173 = vmax.f32 %v1127, 0.0
        %v1174 = vmax.f32 %v1132, 0.0
        %v1175 = vmax.f32 %v1137, 0.0
        %v1176 = vmax.f32 %v1142, 0.0
        %v1177 = vmax.f32 %v1147, 0.0
        %v1178 = vmax.f32 %v1152, 0.0
        %v1179 = vmax.f32 %v1157, 0.0
        %v1180 = vmax.f32 %v1162, 0.0
        %s1181 = scalar_lea.vmem [#allocation3], 640
        %v1182 = vld [vmem:[%s1181] sm:$0xff]
        %v1183 = vld [vmem:[%s1181 + $0x8] sm:$0xff]
        %v1184 = vld [vmem:[%s1181 + $0x10] sm:$0xff]
        %v1185 = vld [vmem:[%s1181 + $0x18] sm:$0xff]
        %v1186 = vld [vmem:[%s1181 + $0x20] sm:$0xff]
        %v1187 = vld [vmem:[%s1181 + $0x28] sm:$0xff]
        %v1188 = vld [vmem:[%s1181 + $0x30] sm:$0xff]
        %v1189 = vld [vmem:[%s1181 + $0x38] sm:$0xff]
        %v1190 = vld [vmem:[%s1181 + $0x40] sm:$0xff]
        %v1191 = vld [vmem:[%s1181 + $0x48] sm:$0xff]
        %v1192 = vld [vmem:[%s1181 + $0x50] sm:$0xff]
        %v1193 = vld [vmem:[%s1181 + $0x58] sm:$0xff]
        %v1194 = vld [vmem:[%s1181 + $0x60] sm:$0xff]
        %v1195 = vld [vmem:[%s1181 + $0x68] sm:$0xff]
        %v1196 = vld [vmem:[%s1181 + $0x70] sm:$0xff]
        %v1197 = vld [vmem:[%s1181 + $0x78] sm:$0xff]
        %v1198 = vld [vmem:[%s2 + $0x5] sm:$0x1]
        %v1199 = vlaneseq
        %v1200 = vshrl.u32 %v1199, 7
        %v1201 = vsub.s32 0, %v1200
        %v1202 = vrot.slane %v1198, %v1201
        %1203 = vmatprep.subr.mxu0 0.0
        %1204 = vmatpush1.msra.mxu0 %v1182
        %1205 = vmatprep.subr.mxu0 0.0
        %1206 = vmatpush1.msra.mxu0 %v1183
        %1207 = vmatprep.subr.mxu0 0.0
        %1208 = vmatpush1.msra.mxu0 %v1184
        %1209 = vmatprep.subr.mxu0 0.0
        %1210 = vmatpush1.msra.mxu0 %v1185
        %1211 = vmatprep.subr.mxu0 0.0
        %1212 = vmatpush1.msra.mxu0 %v1186
        %1213 = vmatprep.subr.mxu0 0.0
        %1214 = vmatpush1.msra.mxu0 %v1187
        %1215 = vmatprep.subr.mxu0 0.0
        %1216 = vmatpush1.msra.mxu0 %v1188
        %1217 = vmatprep.subr.mxu0 0.0
        %1218 = vmatpush1.msra.mxu0 %v1189
        %1219 = vmatprep.subr.mxu0 0.0
        %1220 = vmatpush1.msra.mxu0 %v1190
        %1221 = vmatprep.subr.mxu0 0.0
        %1222 = vmatpush1.msra.mxu0 %v1191
        %1223 = vmatprep.subr.mxu0 0.0
        %1224 = vmatpush1.msra.mxu0 %v1192
        %1225 = vmatprep.subr.mxu0 0.0
        %1226 = vmatpush1.msra.mxu0 %v1193
        %1227 = vmatprep.subr.mxu0 0.0
        %1228 = vmatpush1.msra.mxu0 %v1194
        %1229 = vmatprep.subr.mxu0 0.0
        %1230 = vmatpush1.msra.mxu0 %v1195
        %1231 = vmatprep.subr.mxu0 0.0
        %1232 = vmatpush1.msra.mxu0 %v1196
        %1233 = vmatprep.subr.mxu0 0.0
        %1234 = vmatpush1.msra.mxu0 %v1197
        %1235 = vmatprep.subr.mxu0 0.0
        %1236 = vmatpush1.msra.mxu0 0.0
        %1237 = vmatprep.subr.mxu0 0.0
        %1238 = vmatpush1.msra.mxu0 0.0
        %1239 = vmatprep.subr.mxu0 0.0
        %1240 = vmatpush1.msra.mxu0 0.0
        %1241 = vmatprep.subr.mxu0 0.0
        %1242 = vmatpush1.msra.mxu0 0.0
        %1243 = vmatprep.subr.mxu0 0.0
        %1244 = vmatpush1.msra.mxu0 0.0
        %1245 = vmatprep.subr.mxu0 0.0
        %1246 = vmatpush1.msra.mxu0 0.0
        %1247 = vmatprep.subr.mxu0 0.0
        %1248 = vmatpush1.msra.mxu0 0.0
        %1249 = vmatprep.subr.mxu0 0.0
        %1250 = vmatpush1.msra.mxu0 0.0
        %1251 = vmatprep.subr.mxu0 0.0
        %1252 = vmatpush1.msra.mxu0 0.0
        %1253 = vmatprep.subr.mxu0 0.0
        %1254 = vmatpush1.msra.mxu0 0.0
        %1255 = vmatprep.subr.mxu0 0.0
        %1256 = vmatpush1.msra.mxu0 0.0
        %1257 = vmatprep.subr.mxu0 0.0
        %1258 = vmatpush1.msra.mxu0 0.0
        %1259 = vmatprep.subr.mxu0 0.0
        %1260 = vmatpush1.msra.mxu0 0.0
        %1261 = vmatprep.subr.mxu0 0.0
        %1262 = vmatpush1.msra.mxu0 0.0
        %1263 = vmatprep.subr.mxu0 0.0
        %1264 = vmatpush1.msra.mxu0 0.0
        %1265 = vmatprep.subr.mxu0 0.0
        %1266 = vmatpush1.msra.mxu0 0.0
        %1267 = vmatprep.mubr.f32.mxu0 0.0
        %1268 = vmatmul.mubr.f32.gmra.mrb[0].mxu0 %v1165
        %v1269 = vpop.f32.mrb[0].mxu0
        %v1270 = vadd.f32 %v1202, %v1269
        %v1271 = vpop.f32.mrb[0].mxu0
        %1272 = vmatprep.mubr.f32.mxu0 0.0
        %1273 = vmatmul.mubr.f32.gmra.mrb[0].mxu0 %v1166
        %v1274 = vpop.f32.mrb[0].mxu0
        %v1275 = vadd.f32 %v1202, %v1274
        %v1276 = vpop.f32.mrb[0].mxu0
        %1277 = vmatprep.mubr.f32.mxu0 0.0
        %1278 = vmatmul.mubr.f32.gmra.mrb[0].mxu0 %v1167
        %v1279 = vpop.f32.mrb[0].mxu0
        %v1280 = vadd.f32 %v1202, %v1279
        %v1281 = vpop.f32.mrb[0].mxu0
        %1282 = vmatprep.mubr.f32.mxu0 0.0
        %1283 = vmatmul.mubr.f32.gmra.mrb[0].mxu0 %v1168
        %v1284 = vpop.f32.mrb[0].mxu0
        %v1285 = vadd.f32 %v1202, %v1284
        %v1286 = vpop.f32.mrb[0].mxu0
        %1287 = vmatprep.mubr.f32.mxu0 0.0
        %1288 = vmatmul.mubr.f32.gmra.mrb[0].mxu0 %v1169
        %v1289 = vpop.f32.mrb[0].mxu0
        %v1290 = vadd.f32 %v1202, %v1289
        %v1291 = vpop.f32.mrb[0].mxu0
        %1292 = vmatprep.mubr.f32.mxu0 0.0
        %1293 = vmatmul.mubr.f32.gmra.mrb[0].mxu0 %v1170
        %v1294 = vpop.f32.mrb[0].mxu0
        %v1295 = vadd.f32 %v1202, %v1294
        %v1296 = vpop.f32.mrb[0].mxu0
        %1297 = vmatprep.mubr.f32.mxu0 0.0
        %1298 = vmatmul.mubr.f32.gmra.mrb[0].mxu0 %v1171
        %v1299 = vpop.f32.mrb[0].mxu0
        %v1300 = vadd.f32 %v1202, %v1299
        %v1301 = vpop.f32.mrb[0].mxu0
        %1302 = vmatprep.mubr.f32.mxu0 0.0
        %1303 = vmatmul.mubr.f32.gmra.mrb[0].mxu0 %v1172
        %v1304 = vpop.f32.mrb[0].mxu0
        %v1305 = vadd.f32 %v1202, %v1304
        %v1306 = vpop.f32.mrb[0].mxu0
        %1307 = vmatprep.mubr.f32.mxu0 0.0
        %1308 = vmatmul.mubr.f32.gmra.mrb[0].mxu0 %v1173
        %v1309 = vpop.f32.mrb[0].mxu0
        %v1310 = vadd.f32 %v1202, %v1309
        %v1311 = vpop.f32.mrb[0].mxu0
        %1312 = vmatprep.mubr.f32.mxu0 0.0
        %1313 = vmatmul.mubr.f32.gmra.mrb[0].mxu0 %v1174
        %v1314 = vpop.f32.mrb[0].mxu0
        %v1315 = vadd.f32 %v1202, %v1314
        %v1316 = vpop.f32.mrb[0].mxu0
        %1317 = vmatprep.mubr.f32.mxu0 0.0
        %1318 = vmatmul.mubr.f32.gmra.mrb[0].mxu0 %v1175
        %v1319 = vpop.f32.mrb[0].mxu0
        %v1320 = vadd.f32 %v1202, %v1319
        %v1321 = vpop.f32.mrb[0].mxu0
        %1322 = vmatprep.mubr.f32.mxu0 0.0
        %1323 = vmatmul.mubr.f32.gmra.mrb[0].mxu0 %v1176
        %v1324 = vpop.f32.mrb[0].mxu0
        %v1325 = vadd.f32 %v1202, %v1324
        %v1326 = vpop.f32.mrb[0].mxu0
        %1327 = vmatprep.mubr.f32.mxu0 0.0
        %1328 = vmatmul.mubr.f32.gmra.mrb[0].mxu0 %v1177
        %v1329 = vpop.f32.mrb[0].mxu0
        %v1330 = vadd.f32 %v1202, %v1329
        %v1331 = vpop.f32.mrb[0].mxu0
        %1332 = vmatprep.mubr.f32.mxu0 0.0
        %1333 = vmatmul.mubr.f32.gmra.mrb[0].mxu0 %v1178
        %v1334 = vpop.f32.mrb[0].mxu0
        %v1335 = vadd.f32 %v1202, %v1334
        %v1336 = vpop.f32.mrb[0].mxu0
        %1337 = vmatprep.mubr.f32.mxu0 0.0
        %1338 = vmatmul.mubr.f32.gmra.mrb[0].mxu0 %v1179
        %v1339 = vpop.f32.mrb[0].mxu0
        %v1340 = vadd.f32 %v1202, %v1339
        %v1341 = vpop.f32.mrb[0].mxu0
        %1342 = vmatprep.mubr.f32.mxu0 0.0
        %1343 = vmatmul.mubr.f32.gmra.mrb[0].mxu0 %v1180
        %v1344 = vpop.f32.mrb[0].mxu0
        %v1345 = vadd.f32 %v1202, %v1344
        %v1346 = vpop.f32.mrb[0].mxu0
        %1347 = vdwg.mxu0
        %v1348 = vmax.f32 %v1270, 0.0
        %v1349 = vmax.f32 %v1275, 0.0
        %v1350 = vmax.f32 %v1280, 0.0
        %v1351 = vmax.f32 %v1285, 0.0
        %v1352 = vmax.f32 %v1290, 0.0
        %v1353 = vmax.f32 %v1295, 0.0
        %v1354 = vmax.f32 %v1300, 0.0
        %v1355 = vmax.f32 %v1305, 0.0
        %v1356 = vmax.f32 %v1310, 0.0
        %v1357 = vmax.f32 %v1315, 0.0
        %v1358 = vmax.f32 %v1320, 0.0
        %v1359 = vmax.f32 %v1325, 0.0
        %v1360 = vmax.f32 %v1330, 0.0
        %v1361 = vmax.f32 %v1335, 0.0
        %v1362 = vmax.f32 %v1340, 0.0
        %v1363 = vmax.f32 %v1345, 0.0
        %s1364 = scalar_lea.vmem [#allocation3], 768
        %v1365 = vld [vmem:[%s1364] sm:$0xff]
        %s1366 = sld [smem:[#allocation2]]
        %v1367 = vstv %s1366
        %1368 = vmatprep.subr.mxu0 0.0
        %1369 = vmatpush1.xpose.msra.mxu0 %v1348
        %1370 = vmatprep.subr.mxu0 0.0
        %1371 = vmatpush1.xpose.msra.mxu0 %v1349
        %1372 = vmatprep.subr.mxu0 0.0
        %1373 = vmatpush1.xpose.msra.mxu0 %v1350
        %1374 = vmatprep.subr.mxu0 0.0
        %1375 = vmatpush1.xpose.msra.mxu0 %v1351
        %1376 = vmatprep.subr.mxu0 0.0
        %1377 = vmatpush1.xpose.msra.mxu0 %v1352
        %1378 = vmatprep.subr.mxu0 0.0
        %1379 = vmatpush1.xpose.msra.mxu0 %v1353
        %1380 = vmatprep.subr.mxu0 0.0
        %1381 = vmatpush1.xpose.msra.mxu0 %v1354
        %1382 = vmatprep.subr.mxu0 0.0
        %1383 = vmatpush1.xpose.msra.mxu0 %v1355
        %1384 = vmatprep.subr.mxu0 0.0
        %1385 = vmatpush1.xpose.msra.mxu0 %v1356
        %1386 = vmatprep.subr.mxu0 0.0
        %1387 = vmatpush1.xpose.msra.mxu0 %v1357
        %1388 = vmatprep.subr.mxu0 0.0
        %1389 = vmatpush1.xpose.msra.mxu0 %v1358
        %1390 = vmatprep.subr.mxu0 0.0
        %1391 = vmatpush1.xpose.msra.mxu0 %v1359
        %1392 = vmatprep.subr.mxu0 0.0
        %1393 = vmatpush1.xpose.msra.mxu0 %v1360
        %1394 = vmatprep.subr.mxu0 0.0
        %1395 = vmatpush1.xpose.msra.mxu0 %v1361
        %1396 = vmatprep.subr.mxu0 0.0
        %1397 = vmatpush1.xpose.msra.mxu0 %v1362
        %1398 = vmatprep.subr.mxu0 0.0
        %1399 = vmatpush1.xpose.msra.mxu0 %v1363
        %1400 = vmatprep.subr.mxu0 0.0
        %1401 = vmatpush1.xpose.msra.mxu0 0.0
        %1402 = vmatprep.subr.mxu0 0.0
        %1403 = vmatpush1.xpose.msra.mxu0 0.0
        %1404 = vmatprep.subr.mxu0 0.0
        %1405 = vmatpush1.xpose.msra.mxu0 0.0
        %1406 = vmatprep.subr.mxu0 0.0
        %1407 = vmatpush1.xpose.msra.mxu0 0.0
        %1408 = vmatprep.subr.mxu0 0.0
        %1409 = vmatpush1.xpose.msra.mxu0 0.0
        %1410 = vmatprep.subr.mxu0 0.0
        %1411 = vmatpush1.xpose.msra.mxu0 0.0
        %1412 = vmatprep.subr.mxu0 0.0
        %1413 = vmatpush1.xpose.msra.mxu0 0.0
        %1414 = vmatprep.subr.mxu0 0.0
        %1415 = vmatpush1.xpose.msra.mxu0 0.0
        %1416 = vmatprep.subr.mxu0 0.0
        %1417 = vmatpush1.xpose.msra.mxu0 0.0
        %1418 = vmatprep.subr.mxu0 0.0
        %1419 = vmatpush1.xpose.msra.mxu0 0.0
        %1420 = vmatprep.subr.mxu0 0.0
        %1421 = vmatpush1.xpose.msra.mxu0 0.0
        %1422 = vmatprep.subr.mxu0 0.0
        %1423 = vmatpush1.xpose.msra.mxu0 0.0
        %1424 = vmatprep.subr.mxu0 0.0
        %1425 = vmatpush1.xpose.msra.mxu0 0.0
        %1426 = vmatprep.subr.mxu0 0.0
        %1427 = vmatpush1.xpose.msra.mxu0 0.0
        %1428 = vmatprep.subr.mxu0 0.0
        %1429 = vmatpush1.xpose.msra.mxu0 0.0
        %1430 = vmatprep.subr.mxu0 0.0
        %1431 = vmatpush1.xpose.msra.mxu0 0.0
        %1432 = vmatprep.mubr.f32.mxu0 0.0
        %1433 = vmatmul.mubr.f32.gmra.mrb[0].mxu0 %v1365
        %v1434 = vpop.f32.mrb[0].mxu0
        %v1435 = vadd.f32 %v1367, %v1434
        %v1436 = vpop.f32.mrb[0].mxu0
        %1437 = vdwg.mxu0
        %1438 = vst [vmem:[%s207] sm:$0xff] %v1435
        %s1439 = sand.u32 %s117, 1
        %s1440 = scalar_lea.sflag [#allocation5], %s1439
        %s1441 = sand.u32 %s117, 1
        %s1442 = smul.addr %s1441, 8
        %s1443 = scalar_lea.vmem [#allocation6], %s1442
        // Predicated region
        $region41: #{tpu_custom_call.1} parent=35 // pred_check
          %p1444 = pneg %p127
        $region42: #{tpu_custom_call.1} parent=35 // pred_check_branch
          %1446 = sbr.rel (%p1444) target = $region44
        $region43: #{tpu_custom_call.1} parent=35 // pred_region
          %s1448 = ssub.s32 128, 128
          %1449 = vsyncadd %s1440, %s1448
          %s1450 = smul.addr %s20, 128
          %s1451 = scalar_lea.hbm %s4, %s1450
          %s1453 = sshll.u32 %s1443, 4
          %s1454 = int_to_ptr.vmem [resolvable:$true] %s1453
          %1456 = dma.vmem_to_hbm [thread:$0]  %s1454, 128, %s1451, %s1440
        $region44: #{tpu_custom_call.1} parent=35 // pred_fallthru
          _
      $region36: #{tpu_custom_call.1} parent=5 // pred_fallthru
        _
      %p1457 = scmp.le.s32.totalorder 2, %s15
      // Predicated region
      $region45: #{tpu_custom_call.1} parent=5 // pred_check
        %p1458 = pneg %p1457
      $region46: #{tpu_custom_call.1} parent=5 // pred_check_branch
        %1460 = sbr.rel (%p1458) target = $region48
      $region47: #{tpu_custom_call.1} parent=5 // pred_region
        %s1461 = ssub.s32 %s15, 2
        // Predicated region
        $region49: #{tpu_custom_call.1} parent=47 // pred_check
          %p1462 = pneg %p133
        $region50: #{tpu_custom_call.1} parent=47 // pred_check_branch
          %1464 = sbr.rel (%p1462) target = $region52
        $region51: #{tpu_custom_call.1} parent=47 // pred_region
          %s1465 = sand.u32 %s118, 1
          %s1466 = scalar_lea.sflag [#allocation5], %s1465
          %s1467 = sand.u32 %s118, 1
          %s1468 = smul.addr %s1467, 8
          %s1469 = scalar_lea.vmem [#allocation6], %s1468
          %1470 = dma.done %s1466, 128
        $region52: #{tpu_custom_call.1} parent=47 // pred_fallthru
          _
      $region48: #{tpu_custom_call.1} parent=5 // pred_fallthru
        _
    $region6: #{tpu_custom_call.1} parent=1 // loop_footer
      %s19 = sadd.s32 1, %s15
    $region7: #{tpu_custom_call.1} parent=1 // loop_footer_branch
      %14 = sbr.rel target = $region3
    $region8: #{tpu_custom_call.1} parent=1 // loop_exit
      _
    %1471 = vsyncpa [#allocation4], 1
    %s1472 = scalar_lea.sflag [#allocation4], 1
    %1473 = vsyncpa %s1472, 1
    %1474 = vsyncpa [#allocation5], 1
    %s1475 = scalar_lea.sflag [#allocation5], 1
    %1476 = vsyncpa %s1475, 1

</llo_original>
